<compile_context>
chip_gen: v7x
topology: tpu7x:2x2x1
jax: 0.10.0
libtpu: 0.0.40
codegen_flags: <defaults>
</compile_context>

<pallas_src>
import math
from functools import partial

import jax
import jax.numpy as jnp
from jax.experimental import pallas as pl
from jax.experimental.pallas import tpu as pltpu

LN_EPS = 1e-12  # transformers BertLayerNorm default


def _layer_norm(x, gamma, beta):
    # One-pass statistics: sum and sum-of-squares in a single walk over x,
    # no extra (TQ, H) subtract before the variance reduction.
    inv_h = 1.0 / x.shape[-1]
    s1 = jnp.sum(x, axis=-1, keepdims=True)
    s2 = jnp.sum(x * x, axis=-1, keepdims=True)
    mu = s1 * inv_h
    var = jnp.maximum(s2 * inv_h - mu * mu, 0.0)
    return (x - mu) * jax.lax.rsqrt(var + LN_EPS) * gamma + beta


def _gelu(x):
    # TODO(synk): HF BERT's default "gelu" is erf-based; the tanh approximation
    # is used for guaranteed Mosaic lowering (EUP tanh; deviation ~1e-3).
    c = math.sqrt(2.0 / math.pi)
    return 0.5 * x * (1.0 + jnp.tanh(c * (x + 0.044715 * x * x * x)))


def bert_layer_kernel(num_heads, head_dim, q_tile,
                      h_ref, z_ref, mask_ref,
                      w_q, b_q, w_hkv, b_kv, w_ukv,
                      w_o, b_o, ln1g, ln1b,
                      w_i, b_i, w_o2, b_o2, ln2g, ln2b,
                      out_ref,
                      kv_scratch, ctx_scratch):
    f32 = jnp.float32
    bf16 = jnp.bfloat16
    hidden = num_heads * head_dim

    qi = pl.program_id(1)
    q_start = pl.multiple_of(qi * q_tile, q_tile)
    seq_len = h_ref.shape[1]

    # ---- K/V projection: computed ONCE per batch element and cached as bf16
    # in a persistent VMEM scratch (query axis is "arbitrary", so the cache
    # carries across query tiles; it is rebuilt whenever qi == 0).
    @pl.when(qi == 0)
    def _():
        kv = (jnp.dot(h_ref[0].astype(bf16), w_hkv[...], preferred_element_type=f32)
              + jnp.dot(z_ref[0].astype(bf16), w_ukv[...], preferred_element_type=f32)
              + b_kv[...])                                     # (S, 2H) f32
        kv_scratch[...] = kv.astype(bf16)

    h_q = h_ref[0, pl.ds(q_start, q_tile), :]                  # (TQ, H) f32

    # Additive BERT mask, broadcast ONCE over heads / query rows (hoisted).
    mask_rows = jnp.broadcast_to(mask_ref[0], (q_tile, seq_len))   # (TQ, S) f32

    # ---- query projection; 1/sqrt(head_dim) pre-folded into w_q / b_q ----
    q = (jnp.dot(h_q.astype(bf16), w_q[...], preferred_element_type=f32)
         + b_q[...]).astype(bf16)                              # (TQ, H) bf16

    # ---- multi-head attention; per-head contexts are written into a bf16
    # scratch so the output projection runs as ONE full-width (K = H) GEMM ----
    nt_dims = (((1,), (1,)), ((), ()))   # q @ k^T without an explicit transpose
    for hd in range(num_heads):
        lo = hd * head_dim
        qh = q[:, lo:lo + head_dim]                            # (TQ, d) bf16
        kh = kv_scratch[:, lo:lo + head_dim]                   # (S, d) bf16
        vh = kv_scratch[:, hidden + lo:hidden + lo + head_dim] # (S, d) bf16
        s = jax.lax.dot_general(qh, kh, nt_dims, preferred_element_type=f32)
        s = s + mask_rows
        s = s - jnp.max(s, axis=-1, keepdims=True)
        p = jnp.exp(s)
        p = p * pl.reciprocal(jnp.sum(p, axis=-1, keepdims=True), approx=True)
        # TODO(synk): attention-probs dropout omitted (eval mode -> identity).
        ctx = jnp.dot(p.astype(bf16), vh, preferred_element_type=f32)   # (TQ, d)
        ctx_scratch[:, lo:lo + head_dim] = ctx.astype(bf16)

    attn = (jnp.dot(ctx_scratch[...], w_o[...], preferred_element_type=f32)
            + b_o[...])                                        # (TQ, H) f32

    # ---- BertSelfOutput: residual + LayerNorm (f32 stats) ----
    ln1 = _layer_norm(attn + h_q, ln1g[...], ln1b[...])

    # ---- BertIntermediate: dense + gelu ----
    inter = _gelu(jnp.dot(ln1.astype(bf16), w_i[...], preferred_element_type=f32)
                  + b_i[...])

    # ---- BertOutput: dense + residual + LayerNorm ----
    out = (jnp.dot(inter.astype(bf16), w_o2[...], preferred_element_type=f32)
           + b_o2[...])
    out_ref[0] = _layer_norm(out + ln1, ln2g[...], ln2b[...])


def _choose_q_tile(seq_len, preferred):
    """Largest multiple-of-8 divisor of seq_len that is <= preferred."""
    if seq_len <= preferred:
        return seq_len
    for cand in range(preferred, 7, -8):
        if seq_len % cand == 0:
            return cand
    return seq_len


def _tpu_defaults():
    """Returns (default block_q, physical per-core VMEM bytes) for this TPU."""
    phys_vmem = 64 * 1024 * 1024          # conservative fallback (v7x per-TC)
    try:
        phys_vmem = int(pltpu.get_tpu_info().vmem_capacity_bytes)
    except Exception:
        pass
    try:
        kind = jax.devices()[0].device_kind.lower()
    except Exception:
        kind = ""
    # v5e: 128-wide MXU, no bf16 VPU/EUP -> smaller query tile.
    is_v5e = ("v5 lite" in kind) or ("v5e" in kind) or ("v5lite" in kind)
    return (128 if is_v5e else 256), phys_vmem


def bert_layer_pallas(h, z, mask3, params, num_heads, *, block_q=None):
    """One fused BertLayer (JointFusionAttention + SelfOutput + FFN + Output)."""
    B, S, H = h.shape
    head_dim = H // num_heads
    default_q, phys_vmem = _tpu_defaults()
    q_tile = _choose_q_tile(S, block_q if block_q is not None else default_q)
    num_q = S // q_tile

    f32, bf16 = jnp.float32, jnp.bfloat16
    scale = 1.0 / math.sqrt(head_dim)

    # Host-side weight prep (once per layer call; cheap): fuse the k/v and
    # ukey/uvalue projections into two wide GEMMs, pre-sum their biases, fold
    # 1/sqrt(head_dim) into the query projection, store matmul weights as bf16.
    w_q = (params["wq"] * scale).astype(bf16)
    b_q = (params["bq"] * scale).astype(f32)
    w_hkv = jnp.concatenate([params["wk"], params["wv"]], axis=1).astype(bf16)
    w_ukv = jnp.concatenate([params["wuk"], params["wuv"]], axis=1).astype(bf16)
    b_kv = jnp.concatenate([params["bk"] + params["buk"],
                            params["bv"] + params["buv"]], axis=1).astype(f32)
    w_o = params["wo"].astype(bf16)
    b_o = params["bo"].astype(f32)
    w_i = params["wi"].astype(bf16)
    b_i = params["bi"].astype(f32)
    w_o2 = params["wo2"].astype(bf16)
    b_o2 = params["bo2"].astype(f32)
    ln1g, ln1b = params["ln1g"].astype(f32), params["ln1b"].astype(f32)
    ln2g, ln2b = params["ln2g"].astype(f32), params["ln2b"].astype(f32)

    weights = [w_q, b_q, w_hkv, b_kv, w_ukv,
               w_o, b_o, ln1g, ln1b,
               w_i, b_i, w_o2, b_o2, ln2g, ln2b]

    def const_spec(arr):
        nd = arr.ndim
        # Constant index map -> fetched once per kernel; single-buffer so the
        # resident weights don't pay a 2x VMEM tax (critical on v7x's 64 MiB).
        # TODO(synk): for BERT-large on v7x, additionally stream w_i / w_o2 over
        # the intermediate dimension with pltpu.emit_pipeline if VMEM is tight.
        return pl.BlockSpec(arr.shape, lambda b, q, _nd=nd: (0,) * _nd,
                            pipeline_mode=pl.Buffered(1))

    in_specs = [
        pl.BlockSpec((1, S, H), lambda b, q: (b, 0, 0)),   # hidden_states
        pl.BlockSpec((1, S, H), lambda b, q: (b, 0, 0)),   # z
        pl.BlockSpec((1, 1, S), lambda b, q: (b, 0, 0)),   # additive mask
    ] + [const_spec(w) for w in weights]

    inter_dim = w_i.shape[1]

    # VMEM budget from the actual footprint: single-buffered weights +
    # double-buffered activation blocks + persistent scratch + f32 temporaries,
    # modest headroom, capped below this generation's physical VMEM.
    weight_bytes = sum(int(w.size) * w.dtype.itemsize for w in weights)
    io_bytes = 2 * 4 * (2 * S * H + S + q_tile * H)        # h, z, mask, out (x2 buf)
    scratch_bytes = 2 * (2 * S * H) + 2 * (q_tile * H)     # bf16 K/V cache + ctx
    tmp_bytes = 4 * (2 * S * H                             # f32 kv at qi == 0
                     + 4 * q_tile * H                      # q / attn / ln1 / resid
                     + 2 * q_tile * S                      # scores + probs
                     + q_tile * inter_dim)                 # FFN intermediate
    vmem_limit = (int(1.25 * (weight_bytes + io_bytes + scratch_bytes + tmp_bytes))
                  + (4 << 20))
    vmem_limit = min(max(vmem_limit, 32 << 20), int(0.85 * phys_vmem))

    # Advisory cost estimate; the K/V projection is counted once per batch
    # element (it is cached across query tiles), inputs are read once per batch.
    per_q_flops = (2 * q_tile * H * H              # q projection
                   + 4 * q_tile * S * H            # scores + context (all heads)
                   + 2 * q_tile * H * H            # output projection
                   + 4 * q_tile * H * inter_dim)   # FFN
    kv_flops = 8 * S * H * H                       # fused k/v projections (h and z)
    cost = pl.CostEstimate(
        flops=int(B * (num_q * per_q_flops + kv_flops)),
        transcendentals=int(B * num_q * (num_heads * q_tile * S
                                         + q_tile * inter_dim)),
        bytes_accessed=int(B * 4 * (2 * S * H + S) + weight_bytes + B * S * H * 4))

    return pl.pallas_call(
        partial(bert_layer_kernel, num_heads, head_dim, q_tile),
        out_shape=jax.ShapeDtypeStruct((B, S, H), f32),
        grid=(B, num_q),
        in_specs=in_specs,
        out_specs=pl.BlockSpec((1, q_tile, H), lambda b, q: (b, q, 0)),
        scratch_shapes=[pltpu.VMEM((S, 2 * H), bf16),     # cached K/V per batch
                        pltpu.VMEM((q_tile, H), bf16)],   # concatenated contexts
        compiler_params=pltpu.CompilerParams(
            dimension_semantics=("parallel", "arbitrary"),
            vmem_limit_bytes=vmem_limit),
        cost_estimate=cost,
    )(h, z, mask3, *weights)


def bert_encoder_pallas(hidden_states, z, attention_mask, layer_params,
                        num_heads, *, block_q=None):
    """attention_mask: (B, 1, 1, S) additive mask. Returns (hidden_states,)."""
    B, _, _, S = attention_mask.shape
    mask3 = attention_mask.reshape(B, 1, S).astype(jnp.float32)
    for params in layer_params:
        hidden_states = bert_layer_pallas(hidden_states, z, mask3, params,
                                          num_heads, block_q=block_q)
    return (hidden_states,)


def init_layer_params(key, hidden, intermediate):
    ks = jax.random.split(key, 8)

    def lin(k, fin, fout):
        w = 0.02 * jax.random.normal(k, (fin, fout), jnp.float32)
        b = jnp.zeros((1, fout), jnp.float32)
        return w, b

    wq, bq = lin(ks[0], hidden, hidden)
    wk, bk = lin(ks[1], hidden, hidden)
    wv, bv = lin(ks[2], hidden, hidden)
    wuk, buk = lin(ks[3], hidden, hidden)
    wuv, buv = lin(ks[4], hidden, hidden)
    wo, bo = lin(ks[5], hidden, hidden)
    wi, bi = lin(ks[6], hidden, intermediate)
    wo2, bo2 = lin(ks[7], intermediate, hidden)
    ones = jnp.ones((1, hidden), jnp.float32)
    zeros = jnp.zeros((1, hidden), jnp.float32)
    return dict(wq=wq, bq=bq, wk=wk, bk=bk, wv=wv, bv=bv,
                wuk=wuk, buk=buk, wuv=wuv, buv=buv,
                wo=wo, bo=bo, ln1g=ones, ln1b=zeros,
                wi=wi, bi=bi, wo2=wo2, bo2=bo2, ln2g=ones, ln2b=zeros)


if __name__ == "__main__":
    # Toy config consistent with the module (hidden % heads == 0).  For real
    # benchmarking use H >= 768, S >= 128 so stores are lane-dense; the toy
    # H=32 last-dim necessarily produces masked partial stores.
    B, S, H = 2, 8, 32
    NUM_HEADS = 4
    INTERMEDIATE = 4 * H        # 128
    NUM_LAYERS = 2

    root = jax.random.PRNGKey(0)
    k_h, k_z, k_layers = jax.random.split(root, 3)

    hidden_states = jax.random.normal(k_h, (B, S, H), jnp.float32)
    z = jax.random.normal(k_z, (B, S, H), jnp.float32)

    # BERT-style extended additive mask: (B, 1, 1, S); second example padded.
    lengths = jnp.array([S, S - 2])
    valid = (jnp.arange(S)[None, :] < lengths[:, None]).astype(jnp.float32)
    attention_mask = ((1.0 - valid) * -10000.0).reshape(B, 1, 1, S)

    layer_params = [init_layer_params(k, H, INTERMEDIATE)
                    for k in jax.random.split(k_layers, NUM_LAYERS)]

    outputs = bert_encoder_pallas(hidden_states, z, attention_mask,
                                  layer_params, NUM_HEADS)
    out = jax.block_until_ready(outputs[0])
    assert out.shape == (B, S, H)
    assert bool(jnp.all(jnp.isfinite(out)))
    print("KERNEL_OK")
</pallas_src>

<mosaic_0001>
module attributes {stable_mosaic.version = 11 : i64} {
  func.func @bert_layer_kernel(%arg0: i32, %arg1: i32, %arg2: memref<1x8x32xf32, #tpu.memory_space<vmem>>, %arg3: memref<1x8x32xf32, #tpu.memory_space<vmem>>, %arg4: memref<1x1x8xf32, #tpu.memory_space<vmem>>, %arg5: memref<32x32xbf16, #tpu.memory_space<vmem>>, %arg6: memref<1x32xf32, #tpu.memory_space<vmem>>, %arg7: memref<32x64xbf16, #tpu.memory_space<vmem>>, %arg8: memref<1x64xf32, #tpu.memory_space<vmem>>, %arg9: memref<32x64xbf16, #tpu.memory_space<vmem>>, %arg10: memref<32x32xbf16, #tpu.memory_space<vmem>>, %arg11: memref<1x32xf32, #tpu.memory_space<vmem>>, %arg12: memref<1x32xf32, #tpu.memory_space<vmem>>, %arg13: memref<1x32xf32, #tpu.memory_space<vmem>>, %arg14: memref<32x128xbf16, #tpu.memory_space<vmem>>, %arg15: memref<1x128xf32, #tpu.memory_space<vmem>>, %arg16: memref<128x32xbf16, #tpu.memory_space<vmem>>, %arg17: memref<1x32xf32, #tpu.memory_space<vmem>>, %arg18: memref<1x32xf32, #tpu.memory_space<vmem>>, %arg19: memref<1x32xf32, #tpu.memory_space<vmem>>, %arg20: memref<1x8x32xf32, #tpu.memory_space<vmem>>, %arg21: memref<8x64xbf16, #tpu.memory_space<vmem>>, %arg22: memref<8x32xbf16, #tpu.memory_space<vmem>>) attributes {dimension_semantics = [#tpu.dimension_semantics<parallel>, #tpu.dimension_semantics<arbitrary>], iteration_bounds = array<i64: 2, 1>, scalar_prefetch = 0 : i64, scratch_operands = 2 : i64, tpu.core_type = #tpu.core_type<tc>, window_params = [{transform_indices = @transform_0, window_bounds = array<i64: 1, 8, 32>}, {transform_indices = @transform_1, window_bounds = array<i64: 1, 8, 32>}, {transform_indices = @transform_2, window_bounds = array<i64: 1, 1, 8>}, {pipeline_mode = #tpu.pipeline_mode<synchronous>, transform_indices = @transform_3, window_bounds = array<i64: 32, 32>}, {pipeline_mode = #tpu.pipeline_mode<synchronous>, transform_indices = @transform_4, window_bounds = array<i64: 1, 32>}, {pipeline_mode = #tpu.pipeline_mode<synchronous>, transform_indices = @transform_5, window_bounds = array<i64: 32, 64>}, {pipeline_mode = #tpu.pipeline_mode<synchronous>, transform_indices = @transform_6, window_bounds = array<i64: 1, 64>}, {pipeline_mode = #tpu.pipeline_mode<synchronous>, transform_indices = @transform_7, window_bounds = array<i64: 32, 64>}, {pipeline_mode = #tpu.pipeline_mode<synchronous>, transform_indices = @transform_8, window_bounds = array<i64: 32, 32>}, {pipeline_mode = #tpu.pipeline_mode<synchronous>, transform_indices = @transform_9, window_bounds = array<i64: 1, 32>}, {pipeline_mode = #tpu.pipeline_mode<synchronous>, transform_indices = @transform_10, window_bounds = array<i64: 1, 32>}, {pipeline_mode = #tpu.pipeline_mode<synchronous>, transform_indices = @transform_11, window_bounds = array<i64: 1, 32>}, {pipeline_mode = #tpu.pipeline_mode<synchronous>, transform_indices = @transform_12, window_bounds = array<i64: 32, 128>}, {pipeline_mode = #tpu.pipeline_mode<synchronous>, transform_indices = @transform_13, window_bounds = array<i64: 1, 128>}, {pipeline_mode = #tpu.pipeline_mode<synchronous>, transform_indices = @transform_14, window_bounds = array<i64: 128, 32>}, {pipeline_mode = #tpu.pipeline_mode<synchronous>, transform_indices = @transform_15, window_bounds = array<i64: 1, 32>}, {pipeline_mode = #tpu.pipeline_mode<synchronous>, transform_indices = @transform_16, window_bounds = array<i64: 1, 32>}, {pipeline_mode = #tpu.pipeline_mode<synchronous>, transform_indices = @transform_17, window_bounds = array<i64: 1, 32>}, {transform_indices = @transform_18, window_bounds = array<i64: 1, 8, 32>}]} {
    %c8_i32 = arith.constant 8 : i32
    %0 = arith.muli %arg1, %c8_i32 : i32
    %1 = tpu.assume_multiple %0, 8 : i32
    %c0_i32 = arith.constant 0 : i32
    %2 = arith.cmpi eq, %arg1, %c0_i32 : i32
    %3 = arith.extui %2 : i1 to i32
    %c0_i32_0 = arith.constant 0 : i32
    %4 = arith.cmpi ne, %3, %c0_i32_0 : i32
    scf.if %4 {
      %c0_86 = arith.constant 0 : index
      %c0_87 = arith.constant 0 : index
      %c0_88 = arith.constant 0 : index
      %183 = vector.load %arg2[%c0_86, %c0_87, %c0_88] : memref<1x8x32xf32, #tpu.memory_space<vmem>>, vector<1x8x32xf32>
      %184 = vector.shape_cast %183 : vector<1x8x32xf32> to vector<8x32xf32>
      %185 = arith.truncf %184 : vector<8x32xf32> to vector<8x32xbf16>
      %c0_89 = arith.constant 0 : index
      %c0_90 = arith.constant 0 : index
      %186 = vector.load %arg7[%c0_89, %c0_90] : memref<32x64xbf16, #tpu.memory_space<vmem>>, vector<32x64xbf16>
      %cst_91 = arith.constant dense<0.000000e+00> : vector<8x64xf32>
      %187 = tpu.matmul %185, %186, %cst_91 {dimension_numbers = #tpu.dot_dimension_numbers<[1], [0], [0], [1], [0, 0, 1, 1], [], []>} : vector<8x32xbf16>, vector<32x64xbf16>, vector<8x64xf32> -> vector<8x64xf32>
      %c0_92 = arith.constant 0 : index
      %c0_93 = arith.constant 0 : index
      %c0_94 = arith.constant 0 : index
      %188 = vector.load %arg3[%c0_92, %c0_93, %c0_94] : memref<1x8x32xf32, #tpu.memory_space<vmem>>, vector<1x8x32xf32>
      %189 = vector.shape_cast %188 : vector<1x8x32xf32> to vector<8x32xf32>
      %190 = arith.truncf %189 : vector<8x32xf32> to vector<8x32xbf16>
      %c0_95 = arith.constant 0 : index
      %c0_96 = arith.constant 0 : index
      %191 = vector.load %arg9[%c0_95, %c0_96] : memref<32x64xbf16, #tpu.memory_space<vmem>>, vector<32x64xbf16>
      %cst_97 = arith.constant dense<0.000000e+00> : vector<8x64xf32>
      %192 = tpu.matmul %190, %191, %cst_97 {dimension_numbers = #tpu.dot_dimension_numbers<[1], [0], [0], [1], [0, 0, 1, 1], [], []>} : vector<8x32xbf16>, vector<32x64xbf16>, vector<8x64xf32> -> vector<8x64xf32>
      %193 = arith.addf %187, %192 : vector<8x64xf32>
      %c0_98 = arith.constant 0 : index
      %c0_99 = arith.constant 0 : index
      %194 = vector.load %arg8[%c0_98, %c0_99] : memref<1x64xf32, #tpu.memory_space<vmem>>, vector<1x64xf32>
      %195 = vector.broadcast %194 : vector<1x64xf32> to vector<8x64xf32>
      %196 = arith.addf %193, %195 : vector<8x64xf32>
      %197 = arith.truncf %196 : vector<8x64xf32> to vector<8x64xbf16>
      %c0_100 = arith.constant 0 : index
      %c0_101 = arith.constant 0 : index
      %198 = vector.load %arg21[%c0_100, %c0_101] : memref<8x64xbf16, #tpu.memory_space<vmem>>, vector<8x64xbf16>
      tpu.vector_store %arg21[%c0_100, %c0_101], %197 {strides = array<i32>} : memref<8x64xbf16, #tpu.memory_space<vmem>>, vector<8x64xbf16>,
    } else {
    }
    %c0 = arith.constant 0 : index
    %5 = arith.index_cast %1 : i32 to index
    %c0_1 = arith.constant 0 : index
    %6 = vector.load %arg2[%c0, %5, %c0_1] : memref<1x8x32xf32, #tpu.memory_space<vmem>>, vector<1x8x32xf32>
    %7 = vector.shape_cast %6 : vector<1x8x32xf32> to vector<8x32xf32>
    %c0_2 = arith.constant 0 : index
    %c0_3 = arith.constant 0 : index
    %c0_4 = arith.constant 0 : index
    %8 = vector.load %arg4[%c0_2, %c0_3, %c0_4] : memref<1x1x8xf32, #tpu.memory_space<vmem>>, vector<1x1x8xf32>
    %9 = vector.shape_cast %8 : vector<1x1x8xf32> to vector<1x8xf32>
    %10 = vector.shape_cast %9 : vector<1x8xf32> to vector<1x8xf32>
    %11 = vector.broadcast %10 : vector<1x8xf32> to vector<8x8xf32>
    %12 = arith.truncf %7 : vector<8x32xf32> to vector<8x32xbf16>
    %c0_5 = arith.constant 0 : index
    %c0_6 = arith.constant 0 : index
    %13 = vector.load %arg5[%c0_5, %c0_6] : memref<32x32xbf16, #tpu.memory_space<vmem>>, vector<32x32xbf16>
    %cst = arith.constant dense<0.000000e+00> : vector<8x32xf32>
    %14 = tpu.matmul %12, %13, %cst {dimension_numbers = #tpu.dot_dimension_numbers<[1], [0], [0], [1], [0, 0, 1, 1], [], []>} : vector<8x32xbf16>, vector<32x32xbf16>, vector<8x32xf32> -> vector<8x32xf32>
    %c0_7 = arith.constant 0 : index
    %c0_8 = arith.constant 0 : index
    %15 = vector.load %arg6[%c0_7, %c0_8] : memref<1x32xf32, #tpu.memory_space<vmem>>, vector<1x32xf32>
    %16 = vector.broadcast %15 : vector<1x32xf32> to vector<8x32xf32>
    %17 = arith.addf %14, %16 : vector<8x32xf32>
    %18 = arith.truncf %17 : vector<8x32xf32> to vector<8x32xbf16>
    %19 = vector.extract_strided_slice %18 {offsets = [0, 0], sizes = [8, 8], strides = [1, 1]} : vector<8x32xbf16> to vector<8x8xbf16>
    %c0_9 = arith.constant 0 : index
    %c0_10 = arith.constant 0 : index
    %20 = vector.load %arg21[%c0_9, %c0_10] : memref<8x64xbf16, #tpu.memory_space<vmem>>, vector<8x8xbf16>
    %c0_11 = arith.constant 0 : index
    %c32 = arith.constant 32 : index
    %21 = vector.load %arg21[%c0_11, %c32] : memref<8x64xbf16, #tpu.memory_space<vmem>>, vector<8x8xbf16>
    %cst_12 = arith.constant dense<0.000000e+00> : vector<8x8xf32>
    %22 = tpu.matmul %19, %20, %cst_12 {dimension_numbers = #tpu.dot_dimension_numbers<[1], [1], [0], [0], [0, 0, 1, 0], [], []>} : vector<8x8xbf16>, vector<8x8xbf16>, vector<8x8xf32> -> vector<8x8xf32>
    %23 = arith.addf %22, %11 : vector<8x8xf32>
    %cst_13 = arith.constant dense<0xFF800000> : vector<8xf32>
    %24 = vector.multi_reduction <maximumf>, %23, %cst_13 [1] : vector<8x8xf32> to vector<8xf32>
    %25 = vector.shape_cast %24 : vector<8xf32> to vector<8x1xf32>
    %26 = vector.broadcast %25 : vector<8x1xf32> to vector<8x8xf32>
    %27 = arith.subf %23, %26 : vector<8x8xf32>
    %28 = math.exp %27 : vector<8x8xf32>
    %cst_14 = arith.constant dense<0.000000e+00> : vector<8xf32>
    %29 = vector.multi_reduction <add>, %28, %cst_14 [1] : vector<8x8xf32> to vector<8xf32>
    %30 = vector.shape_cast %29 : vector<8xf32> to vector<8x1xf32>
    %31 = tpu.reciprocal %30 {approx = true} : vector<8x1xf32> -> vector<8x1xf32>
    %32 = vector.broadcast %31 : vector<8x1xf32> to vector<8x8xf32>
    %33 = arith.mulf %28, %32 : vector<8x8xf32>
    %34 = arith.truncf %33 : vector<8x8xf32> to vector<8x8xbf16>
    %cst_15 = arith.constant dense<0.000000e+00> : vector<8x8xf32>
    %35 = tpu.matmul %34, %21, %cst_15 {dimension_numbers = #tpu.dot_dimension_numbers<[1], [0], [0], [1], [0, 0, 1, 1], [], []>} : vector<8x8xbf16>, vector<8x8xbf16>, vector<8x8xf32> -> vector<8x8xf32>
    %36 = arith.truncf %35 : vector<8x8xf32> to vector<8x8xbf16>
    %c0_16 = arith.constant 0 : index
    %c0_17 = arith.constant 0 : index
    %37 = vector.load %arg22[%c0_16, %c0_17] : memref<8x32xbf16, #tpu.memory_space<vmem>>, vector<8x8xbf16>
    tpu.vector_store %arg22[%c0_16, %c0_17], %36 {strides = array<i32>} : memref<8x32xbf16, #tpu.memory_space<vmem>>, vector<8x8xbf16>,
    %38 = vector.extract_strided_slice %18 {offsets = [0, 8], sizes = [8, 8], strides = [1, 1]} : vector<8x32xbf16> to vector<8x8xbf16>
    %c0_18 = arith.constant 0 : index
    %c8 = arith.constant 8 : index
    %39 = vector.load %arg21[%c0_18, %c8] : memref<8x64xbf16, #tpu.memory_space<vmem>>, vector<8x8xbf16>
    %c0_19 = arith.constant 0 : index
    %c40 = arith.constant 40 : index
    %40 = vector.load %arg21[%c0_19, %c40] : memref<8x64xbf16, #tpu.memory_space<vmem>>, vector<8x8xbf16>
    %cst_20 = arith.constant dense<0.000000e+00> : vector<8x8xf32>
    %41 = tpu.matmul %38, %39, %cst_20 {dimension_numbers = #tpu.dot_dimension_numbers<[1], [1], [0], [0], [0, 0, 1, 0], [], []>} : vector<8x8xbf16>, vector<8x8xbf16>, vector<8x8xf32> -> vector<8x8xf32>
    %42 = arith.addf %41, %11 : vector<8x8xf32>
    %cst_21 = arith.constant dense<0xFF800000> : vector<8xf32>
    %43 = vector.multi_reduction <maximumf>, %42, %cst_21 [1] : vector<8x8xf32> to vector<8xf32>
    %44 = vector.shape_cast %43 : vector<8xf32> to vector<8x1xf32>
    %45 = vector.broadcast %44 : vector<8x1xf32> to vector<8x8xf32>
    %46 = arith.subf %42, %45 : vector<8x8xf32>
    %47 = math.exp %46 : vector<8x8xf32>
    %cst_22 = arith.constant dense<0.000000e+00> : vector<8xf32>
    %48 = vector.multi_reduction <add>, %47, %cst_22 [1] : vector<8x8xf32> to vector<8xf32>
    %49 = vector.shape_cast %48 : vector<8xf32> to vector<8x1xf32>
    %50 = tpu.reciprocal %49 {approx = true} : vector<8x1xf32> -> vector<8x1xf32>
    %51 = vector.broadcast %50 : vector<8x1xf32> to vector<8x8xf32>
    %52 = arith.mulf %47, %51 : vector<8x8xf32>
    %53 = arith.truncf %52 : vector<8x8xf32> to vector<8x8xbf16>
    %cst_23 = arith.constant dense<0.000000e+00> : vector<8x8xf32>
    %54 = tpu.matmul %53, %40, %cst_23 {dimension_numbers = #tpu.dot_dimension_numbers<[1], [0], [0], [1], [0, 0, 1, 1], [], []>} : vector<8x8xbf16>, vector<8x8xbf16>, vector<8x8xf32> -> vector<8x8xf32>
    %55 = arith.truncf %54 : vector<8x8xf32> to vector<8x8xbf16>
    %c0_24 = arith.constant 0 : index
    %c8_25 = arith.constant 8 : index
    %56 = vector.load %arg22[%c0_24, %c8_25] : memref<8x32xbf16, #tpu.memory_space<vmem>>, vector<8x8xbf16>
    tpu.vector_store %arg22[%c0_24, %c8_25], %55 {strides = array<i32>} : memref<8x32xbf16, #tpu.memory_space<vmem>>, vector<8x8xbf16>,
    %57 = vector.extract_strided_slice %18 {offsets = [0, 16], sizes = [8, 8], strides = [1, 1]} : vector<8x32xbf16> to vector<8x8xbf16>
    %c0_26 = arith.constant 0 : index
    %c16 = arith.constant 16 : index
    %58 = vector.load %arg21[%c0_26, %c16] : memref<8x64xbf16, #tpu.memory_space<vmem>>, vector<8x8xbf16>
    %c0_27 = arith.constant 0 : index
    %c48 = arith.constant 48 : index
    %59 = vector.load %arg21[%c0_27, %c48] : memref<8x64xbf16, #tpu.memory_space<vmem>>, vector<8x8xbf16>
    %cst_28 = arith.constant dense<0.000000e+00> : vector<8x8xf32>
    %60 = tpu.matmul %57, %58, %cst_28 {dimension_numbers = #tpu.dot_dimension_numbers<[1], [1], [0], [0], [0, 0, 1, 0], [], []>} : vector<8x8xbf16>, vector<8x8xbf16>, vector<8x8xf32> -> vector<8x8xf32>
    %61 = arith.addf %60, %11 : vector<8x8xf32>
    %cst_29 = arith.constant dense<0xFF800000> : vector<8xf32>
    %62 = vector.multi_reduction <maximumf>, %61, %cst_29 [1] : vector<8x8xf32> to vector<8xf32>
    %63 = vector.shape_cast %62 : vector<8xf32> to vector<8x1xf32>
    %64 = vector.broadcast %63 : vector<8x1xf32> to vector<8x8xf32>
    %65 = arith.subf %61, %64 : vector<8x8xf32>
    %66 = math.exp %65 : vector<8x8xf32>
    %cst_30 = arith.constant dense<0.000000e+00> : vector<8xf32>
    %67 = vector.multi_reduction <add>, %66, %cst_30 [1] : vector<8x8xf32> to vector<8xf32>
    %68 = vector.shape_cast %67 : vector<8xf32> to vector<8x1xf32>
    %69 = tpu.reciprocal %68 {approx = true} : vector<8x1xf32> -> vector<8x1xf32>
    %70 = vector.broadcast %69 : vector<8x1xf32> to vector<8x8xf32>
    %71 = arith.mulf %66, %70 : vector<8x8xf32>
    %72 = arith.truncf %71 : vector<8x8xf32> to vector<8x8xbf16>
    %cst_31 = arith.constant dense<0.000000e+00> : vector<8x8xf32>
    %73 = tpu.matmul %72, %59, %cst_31 {dimension_numbers = #tpu.dot_dimension_numbers<[1], [0], [0], [1], [0, 0, 1, 1], [], []>} : vector<8x8xbf16>, vector<8x8xbf16>, vector<8x8xf32> -> vector<8x8xf32>
    %74 = arith.truncf %73 : vector<8x8xf32> to vector<8x8xbf16>
    %c0_32 = arith.constant 0 : index
    %c16_33 = arith.constant 16 : index
    %75 = vector.load %arg22[%c0_32, %c16_33] : memref<8x32xbf16, #tpu.memory_space<vmem>>, vector<8x8xbf16>
    tpu.vector_store %arg22[%c0_32, %c16_33], %74 {strides = array<i32>} : memref<8x32xbf16, #tpu.memory_space<vmem>>, vector<8x8xbf16>,
    %76 = vector.extract_strided_slice %18 {offsets = [0, 24], sizes = [8, 8], strides = [1, 1]} : vector<8x32xbf16> to vector<8x8xbf16>
    %c0_34 = arith.constant 0 : index
    %c24 = arith.constant 24 : index
    %77 = vector.load %arg21[%c0_34, %c24] : memref<8x64xbf16, #tpu.memory_space<vmem>>, vector<8x8xbf16>
    %c0_35 = arith.constant 0 : index
    %c56 = arith.constant 56 : index
    %78 = vector.load %arg21[%c0_35, %c56] : memref<8x64xbf16, #tpu.memory_space<vmem>>, vector<8x8xbf16>
    %cst_36 = arith.constant dense<0.000000e+00> : vector<8x8xf32>
    %79 = tpu.matmul %76, %77, %cst_36 {dimension_numbers = #tpu.dot_dimension_numbers<[1], [1], [0], [0], [0, 0, 1, 0], [], []>} : vector<8x8xbf16>, vector<8x8xbf16>, vector<8x8xf32> -> vector<8x8xf32>
    %80 = arith.addf %79, %11 : vector<8x8xf32>
    %cst_37 = arith.constant dense<0xFF800000> : vector<8xf32>
    %81 = vector.multi_reduction <maximumf>, %80, %cst_37 [1] : vector<8x8xf32> to vector<8xf32>
    %82 = vector.shape_cast %81 : vector<8xf32> to vector<8x1xf32>
    %83 = vector.broadcast %82 : vector<8x1xf32> to vector<8x8xf32>
    %84 = arith.subf %80, %83 : vector<8x8xf32>
    %85 = math.exp %84 : vector<8x8xf32>
    %cst_38 = arith.constant dense<0.000000e+00> : vector<8xf32>
    %86 = vector.multi_reduction <add>, %85, %cst_38 [1] : vector<8x8xf32> to vector<8xf32>
    %87 = vector.shape_cast %86 : vector<8xf32> to vector<8x1xf32>
    %88 = tpu.reciprocal %87 {approx = true} : vector<8x1xf32> -> vector<8x1xf32>
    %89 = vector.broadcast %88 : vector<8x1xf32> to vector<8x8xf32>
    %90 = arith.mulf %85, %89 : vector<8x8xf32>
    %91 = arith.truncf %90 : vector<8x8xf32> to vector<8x8xbf16>
    %cst_39 = arith.constant dense<0.000000e+00> : vector<8x8xf32>
    %92 = tpu.matmul %91, %78, %cst_39 {dimension_numbers = #tpu.dot_dimension_numbers<[1], [0], [0], [1], [0, 0, 1, 1], [], []>} : vector<8x8xbf16>, vector<8x8xbf16>, vector<8x8xf32> -> vector<8x8xf32>
    %93 = arith.truncf %92 : vector<8x8xf32> to vector<8x8xbf16>
    %c0_40 = arith.constant 0 : index
    %c24_41 = arith.constant 24 : index
    %94 = vector.load %arg22[%c0_40, %c24_41] : memref<8x32xbf16, #tpu.memory_space<vmem>>, vector<8x8xbf16>
    tpu.vector_store %arg22[%c0_40, %c24_41], %93 {strides = array<i32>} : memref<8x32xbf16, #tpu.memory_space<vmem>>, vector<8x8xbf16>,
    %c0_42 = arith.constant 0 : index
    %c0_43 = arith.constant 0 : index
    %95 = vector.load %arg22[%c0_42, %c0_43] : memref<8x32xbf16, #tpu.memory_space<vmem>>, vector<8x32xbf16>
    %c0_44 = arith.constant 0 : index
    %c0_45 = arith.constant 0 : index
    %96 = vector.load %arg10[%c0_44, %c0_45] : memref<32x32xbf16, #tpu.memory_space<vmem>>, vector<32x32xbf16>
    %cst_46 = arith.constant dense<0.000000e+00> : vector<8x32xf32>
    %97 = tpu.matmul %95, %96, %cst_46 {dimension_numbers = #tpu.dot_dimension_numbers<[1], [0], [0], [1], [0, 0, 1, 1], [], []>} : vector<8x32xbf16>, vector<32x32xbf16>, vector<8x32xf32> -> vector<8x32xf32>
    %c0_47 = arith.constant 0 : index
    %c0_48 = arith.constant 0 : index
    %98 = vector.load %arg11[%c0_47, %c0_48] : memref<1x32xf32, #tpu.memory_space<vmem>>, vector<1x32xf32>
    %99 = vector.broadcast %98 : vector<1x32xf32> to vector<8x32xf32>
    %100 = arith.addf %97, %99 : vector<8x32xf32>
    %101 = arith.addf %100, %7 : vector<8x32xf32>
    %c0_49 = arith.constant 0 : index
    %c0_50 = arith.constant 0 : index
    %102 = vector.load %arg12[%c0_49, %c0_50] : memref<1x32xf32, #tpu.memory_space<vmem>>, vector<1x32xf32>
    %c0_51 = arith.constant 0 : index
    %c0_52 = arith.constant 0 : index
    %103 = vector.load %arg13[%c0_51, %c0_52] : memref<1x32xf32, #tpu.memory_space<vmem>>, vector<1x32xf32>
    %cst_53 = arith.constant dense<0.000000e+00> : vector<8xf32>
    %104 = vector.multi_reduction <add>, %101, %cst_53 [1] : vector<8x32xf32> to vector<8xf32>
    %105 = vector.shape_cast %104 : vector<8xf32> to vector<8x1xf32>
    %106 = arith.mulf %101, %101 : vector<8x32xf32>
    %cst_54 = arith.constant dense<0.000000e+00> : vector<8xf32>
    %107 = vector.multi_reduction <add>, %106, %cst_54 [1] : vector<8x32xf32> to vector<8xf32>
    %108 = vector.shape_cast %107 : vector<8xf32> to vector<8x1xf32>
    %cst_55 = arith.constant 3.125000e-02 : f32
    %109 = vector.broadcast %cst_55 : f32 to vector<8x1xf32>
    %110 = arith.mulf %105, %109 : vector<8x1xf32>
    %cst_56 = arith.constant 3.125000e-02 : f32
    %111 = vector.broadcast %cst_56 : f32 to vector<8x1xf32>
    %112 = arith.mulf %108, %111 : vector<8x1xf32>
    %113 = arith.mulf %110, %110 : vector<8x1xf32>
    %114 = arith.subf %112, %113 : vector<8x1xf32>
    %cst_57 = arith.constant 0.000000e+00 : f32
    %115 = vector.broadcast %cst_57 : f32 to vector<8x1xf32>
    %116 = arith.maximumf %114, %115 : vector<8x1xf32>
    %117 = vector.broadcast %110 : vector<8x1xf32> to vector<8x32xf32>
    %118 = arith.subf %101, %117 : vector<8x32xf32>
    %cst_58 = arith.constant 9.99999996E-13 : f32
    %119 = vector.broadcast %cst_58 : f32 to vector<8x1xf32>
    %120 = arith.addf %116, %119 : vector<8x1xf32>
    %121 = math.rsqrt %120 : vector<8x1xf32>
    %122 = vector.broadcast %121 : vector<8x1xf32> to vector<8x32xf32>
    %123 = arith.mulf %118, %122 : vector<8x32xf32>
    %124 = vector.broadcast %102 : vector<1x32xf32> to vector<8x32xf32>
    %125 = arith.mulf %123, %124 : vector<8x32xf32>
    %126 = vector.broadcast %103 : vector<1x32xf32> to vector<8x32xf32>
    %127 = arith.addf %125, %126 : vector<8x32xf32>
    %128 = arith.truncf %127 : vector<8x32xf32> to vector<8x32xbf16>
    %c0_59 = arith.constant 0 : index
    %c0_60 = arith.constant 0 : index
    %129 = vector.load %arg14[%c0_59, %c0_60] : memref<32x128xbf16, #tpu.memory_space<vmem>>, vector<32x128xbf16>
    %cst_61 = arith.constant dense<0.000000e+00> : vector<8x128xf32>
    %130 = tpu.matmul %128, %129, %cst_61 {dimension_numbers = #tpu.dot_dimension_numbers<[1], [0], [0], [1], [0, 0, 1, 1], [], []>} : vector<8x32xbf16>, vector<32x128xbf16>, vector<8x128xf32> -> vector<8x128xf32>
    %c0_62 = arith.constant 0 : index
    %c0_63 = arith.constant 0 : index
    %131 = vector.load %arg15[%c0_62, %c0_63] : memref<1x128xf32, #tpu.memory_space<vmem>>, vector<1x128xf32>
    %132 = vector.broadcast %131 : vector<1x128xf32> to vector<8x128xf32>
    %133 = arith.addf %130, %132 : vector<8x128xf32>
    %cst_64 = arith.constant 5.000000e-01 : f32
    %134 = vector.broadcast %cst_64 : f32 to vector<8x128xf32>
    %135 = arith.mulf %134, %133 : vector<8x128xf32>
    %cst_65 = arith.constant 4.471500e-02 : f32
    %136 = vector.broadcast %cst_65 : f32 to vector<8x128xf32>
    %137 = arith.mulf %136, %133 : vector<8x128xf32>
    %138 = arith.mulf %137, %133 : vector<8x128xf32>
    %139 = arith.mulf %138, %133 : vector<8x128xf32>
    %140 = arith.addf %133, %139 : vector<8x128xf32>
    %cst_66 = arith.constant 0.797884583 : f32
    %141 = vector.broadcast %cst_66 : f32 to vector<8x128xf32>
    %142 = arith.mulf %141, %140 : vector<8x128xf32>
    %143 = math.tanh %142 : vector<8x128xf32>
    %cst_67 = arith.constant 1.000000e+00 : f32
    %144 = vector.broadcast %cst_67 : f32 to vector<8x128xf32>
    %145 = arith.addf %144, %143 : vector<8x128xf32>
    %146 = arith.mulf %135, %145 : vector<8x128xf32>
    %147 = arith.truncf %146 : vector<8x128xf32> to vector<8x128xbf16>
    %c0_68 = arith.constant 0 : index
    %c0_69 = arith.constant 0 : index
    %148 = vector.load %arg16[%c0_68, %c0_69] : memref<128x32xbf16, #tpu.memory_space<vmem>>, vector<128x32xbf16>
    %cst_70 = arith.constant dense<0.000000e+00> : vector<8x32xf32>
    %149 = tpu.matmul %147, %148, %cst_70 {dimension_numbers = #tpu.dot_dimension_numbers<[1], [0], [0], [1], [0, 0, 1, 1], [], []>} : vector<8x128xbf16>, vector<128x32xbf16>, vector<8x32xf32> -> vector<8x32xf32>
    %c0_71 = arith.constant 0 : index
    %c0_72 = arith.constant 0 : index
    %150 = vector.load %arg17[%c0_71, %c0_72] : memref<1x32xf32, #tpu.memory_space<vmem>>, vector<1x32xf32>
    %151 = vector.broadcast %150 : vector<1x32xf32> to vector<8x32xf32>
    %152 = arith.addf %149, %151 : vector<8x32xf32>
    %153 = arith.addf %152, %127 : vector<8x32xf32>
    %c0_73 = arith.constant 0 : index
    %c0_74 = arith.constant 0 : index
    %154 = vector.load %arg18[%c0_73, %c0_74] : memref<1x32xf32, #tpu.memory_space<vmem>>, vector<1x32xf32>
    %c0_75 = arith.constant 0 : index
    %c0_76 = arith.constant 0 : index
    %155 = vector.load %arg19[%c0_75, %c0_76] : memref<1x32xf32, #tpu.memory_space<vmem>>, vector<1x32xf32>
    %cst_77 = arith.constant dense<0.000000e+00> : vector<8xf32>
    %156 = vector.multi_reduction <add>, %153, %cst_77 [1] : vector<8x32xf32> to vector<8xf32>
    %157 = vector.shape_cast %156 : vector<8xf32> to vector<8x1xf32>
    %158 = arith.mulf %153, %153 : vector<8x32xf32>
    %cst_78 = arith.constant dense<0.000000e+00> : vector<8xf32>
    %159 = vector.multi_reduction <add>, %158, %cst_78 [1] : vector<8x32xf32> to vector<8xf32>
    %160 = vector.shape_cast %159 : vector<8xf32> to vector<8x1xf32>
    %cst_79 = arith.constant 3.125000e-02 : f32
    %161 = vector.broadcast %cst_79 : f32 to vector<8x1xf32>
    %162 = arith.mulf %157, %161 : vector<8x1xf32>
    %cst_80 = arith.constant 3.125000e-02 : f32
    %163 = vector.broadcast %cst_80 : f32 to vector<8x1xf32>
    %164 = arith.mulf %160, %163 : vector<8x1xf32>
    %165 = arith.mulf %162, %162 : vector<8x1xf32>
    %166 = arith.subf %164, %165 : vector<8x1xf32>
    %cst_81 = arith.constant 0.000000e+00 : f32
    %167 = vector.broadcast %cst_81 : f32 to vector<8x1xf32>
    %168 = arith.maximumf %166, %167 : vector<8x1xf32>
    %169 = vector.broadcast %162 : vector<8x1xf32> to vector<8x32xf32>
    %170 = arith.subf %153, %169 : vector<8x32xf32>
    %cst_82 = arith.constant 9.99999996E-13 : f32
    %171 = vector.broadcast %cst_82 : f32 to vector<8x1xf32>
    %172 = arith.addf %168, %171 : vector<8x1xf32>
    %173 = math.rsqrt %172 : vector<8x1xf32>
    %174 = vector.broadcast %173 : vector<8x1xf32> to vector<8x32xf32>
    %175 = arith.mulf %170, %174 : vector<8x32xf32>
    %176 = vector.broadcast %154 : vector<1x32xf32> to vector<8x32xf32>
    %177 = arith.mulf %175, %176 : vector<8x32xf32>
    %178 = vector.broadcast %155 : vector<1x32xf32> to vector<8x32xf32>
    %179 = arith.addf %177, %178 : vector<8x32xf32>
    %c0_83 = arith.constant 0 : index
    %c0_84 = arith.constant 0 : index
    %c0_85 = arith.constant 0 : index
    %180 = vector.load %arg20[%c0_83, %c0_84, %c0_85] : memref<1x8x32xf32, #tpu.memory_space<vmem>>, vector<1x8x32xf32>
    %181 = vector.shape_cast %180 : vector<1x8x32xf32> to vector<8x32xf32>
    %182 = vector.shape_cast %179 : vector<8x32xf32> to vector<1x8x32xf32>
    tpu.vector_store %arg20[%c0_83, %c0_84, %c0_85], %182 {strides = array<i32>} : memref<1x8x32xf32, #tpu.memory_space<vmem>>, vector<1x8x32xf32>,
    return
  }
  func.func @transform_0(%arg0: i32, %arg1: i32) -> (i32, i32, i32) {
    %c0_i32 = arith.constant 0 : i32
    %c0_i32_0 = arith.constant 0 : i32
    %c0_i32_1 = arith.constant 0 : i32
    return %arg0, %c0_i32, %c0_i32_0 : i32, i32, i32
  }
  func.func @transform_1(%arg0: i32, %arg1: i32) -> (i32, i32, i32) {
    %c0_i32 = arith.constant 0 : i32
    %c0_i32_0 = arith.constant 0 : i32
    %c0_i32_1 = arith.constant 0 : i32
    return %arg0, %c0_i32, %c0_i32_0 : i32, i32, i32
  }
  func.func @transform_2(%arg0: i32, %arg1: i32) -> (i32, i32, i32) {
    %c0_i32 = arith.constant 0 : i32
    %c0_i32_0 = arith.constant 0 : i32
    %c0_i32_1 = arith.constant 0 : i32
    return %arg0, %c0_i32, %c0_i32_0 : i32, i32, i32
  }
  func.func @transform_3(%arg0: i32, %arg1: i32) -> (i32, i32) {
    %c0_i32 = arith.constant 0 : i32
    %c0_i32_0 = arith.constant 0 : i32
    %c0_i32_1 = arith.constant 0 : i32
    return %c0_i32, %c0_i32_0 : i32, i32
  }
  func.func @transform_4(%arg0: i32, %arg1: i32) -> (i32, i32) {
    %c0_i32 = arith.constant 0 : i32
    %c0_i32_0 = arith.constant 0 : i32
    %c0_i32_1 = arith.constant 0 : i32
    return %c0_i32, %c0_i32_0 : i32, i32
  }
  func.func @transform_5(%arg0: i32, %arg1: i32) -> (i32, i32) {
    %c0_i32 = arith.constant 0 : i32
    %c0_i32_0 = arith.constant 0 : i32
    %c0_i32_1 = arith.constant 0 : i32
    return %c0_i32, %c0_i32_0 : i32, i32
  }
  func.func @transform_6(%arg0: i32, %arg1: i32) -> (i32, i32) {
    %c0_i32 = arith.constant 0 : i32
    %c0_i32_0 = arith.constant 0 : i32
    %c0_i32_1 = arith.constant 0 : i32
    return %c0_i32, %c0_i32_0 : i32, i32
  }
  func.func @transform_7(%arg0: i32, %arg1: i32) -> (i32, i32) {
    %c0_i32 = arith.constant 0 : i32
    %c0_i32_0 = arith.constant 0 : i32
    %c0_i32_1 = arith.constant 0 : i32
    return %c0_i32, %c0_i32_0 : i32, i32
  }
  func.func @transform_8(%arg0: i32, %arg1: i32) -> (i32, i32) {
    %c0_i32 = arith.constant 0 : i32
    %c0_i32_0 = arith.constant 0 : i32
    %c0_i32_1 = arith.constant 0 : i32
    return %c0_i32, %c0_i32_0 : i32, i32
  }
  func.func @transform_9(%arg0: i32, %arg1: i32) -> (i32, i32) {
    %c0_i32 = arith.constant 0 : i32
    %c0_i32_0 = arith.constant 0 : i32
    %c0_i32_1 = arith.constant 0 : i32
    return %c0_i32, %c0_i32_0 : i32, i32
  }
  func.func @transform_10(%arg0: i32, %arg1: i32) -> (i32, i32) {
    %c0_i32 = arith.constant 0 : i32
    %c0_i32_0 = arith.constant 0 : i32
    %c0_i32_1 = arith.constant 0 : i32
    return %c0_i32, %c0_i32_0 : i32, i32
  }
  func.func @transform_11(%arg0: i32, %arg1: i32) -> (i32, i32) {
    %c0_i32 = arith.constant 0 : i32
    %c0_i32_0 = arith.constant 0 : i32
    %c0_i32_1 = arith.constant 0 : i32
    return %c0_i32, %c0_i32_0 : i32, i32
  }
  func.func @transform_12(%arg0: i32, %arg1: i32) -> (i32, i32) {
    %c0_i32 = arith.constant 0 : i32
    %c0_i32_0 = arith.constant 0 : i32
    %c0_i32_1 = arith.constant 0 : i32
    return %c0_i32, %c0_i32_0 : i32, i32
  }
  func.func @transform_13(%arg0: i32, %arg1: i32) -> (i32, i32) {
    %c0_i32 = arith.constant 0 : i32
    %c0_i32_0 = arith.constant 0 : i32
    %c0_i32_1 = arith.constant 0 : i32
    return %c0_i32, %c0_i32_0 : i32, i32
  }
  func.func @transform_14(%arg0: i32, %arg1: i32) -> (i32, i32) {
    %c0_i32 = arith.constant 0 : i32
    %c0_i32_0 = arith.constant 0 : i32
    %c0_i32_1 = arith.constant 0 : i32
    return %c0_i32, %c0_i32_0 : i32, i32
  }
  func.func @transform_15(%arg0: i32, %arg1: i32) -> (i32, i32) {
    %c0_i32 = arith.constant 0 : i32
    %c0_i32_0 = arith.constant 0 : i32
    %c0_i32_1 = arith.constant 0 : i32
    return %c0_i32, %c0_i32_0 : i32, i32
  }
  func.func @transform_16(%arg0: i32, %arg1: i32) -> (i32, i32) {
    %c0_i32 = arith.constant 0 : i32
    %c0_i32_0 = arith.constant 0 : i32
    %c0_i32_1 = arith.constant 0 : i32
    return %c0_i32, %c0_i32_0 : i32, i32
  }
  func.func @transform_17(%arg0: i32, %arg1: i32) -> (i32, i32) {
    %c0_i32 = arith.constant 0 : i32
    %c0_i32_0 = arith.constant 0 : i32
    %c0_i32_1 = arith.constant 0 : i32
    return %c0_i32, %c0_i32_0 : i32, i32
  }
  func.func @transform_18(%arg0: i32, %arg1: i32) -> (i32, i32, i32) {
    %c0_i32 = arith.constant 0 : i32
    %c0_i32_0 = arith.constant 0 : i32
    return %arg0, %arg1, %c0_i32 : i32, i32, i32
  }
}

</mosaic_0001>

<llo_original>
// kernel: tpu_custom_call.1
$region0: #{tpu_custom_call.1}
  #allocation0 [shape = 'u32[]', space=smem, size = 0x4, offset = 0x4, fixed_abs, tag = 'smem constant byte address 0x4 - core index']
  #allocation1 [shape = 'u32[144,128]{1,0:T(1,128)}', space=vmem, size = 0x12000, scoped, tag = 'internal scratch']
  #allocation2 [shape = 'bf16[8,64]{1,0:T(8,128)(2,1)}', space=vmem, size = 0x800, scoped, tag = 'scratch operand']
  #allocation3 [shape = 'bf16[8,32]{1,0:T(8,128)(2,1)}', space=vmem, size = 0x800, scoped, tag = 'scratch operand']
  %s0 = inlined_call_operand.vmem [shape: f32[2,8,32], index: 0, kind: input, shape index: {}]
  %s1 = inlined_call_operand.vmem [shape: f32[2,8,32], index: 1, kind: input, shape index: {}]
  %s2 = inlined_call_operand.vmem [shape: f32[2,1,8], index: 2, kind: input, shape index: {}]
  %s3 = inlined_call_operand.vmem [shape: bf16[32,32], index: 3, kind: input, shape index: {}]
  %s4 = inlined_call_operand.hbm [shape: f32[1,32], index: 4, kind: input, shape index: {}]
  %s5 = inlined_call_operand.vmem [shape: bf16[32,64], index: 5, kind: input, shape index: {}]
  %s6 = inlined_call_operand.hbm [shape: f32[1,64], index: 6, kind: input, shape index: {}]
  %s7 = inlined_call_operand.vmem [shape: bf16[32,64], index: 7, kind: input, shape index: {}]
  %s8 = inlined_call_operand.hbm [shape: bf16[32,32], index: 8, kind: input, shape index: {}]
  %s9 = inlined_call_operand.hbm [shape: f32[1,32], index: 9, kind: input, shape index: {}]
  %s10 = inlined_call_operand.vmem [shape: f32[1,32], index: 10, kind: input, shape index: {}]
  %s11 = inlined_call_operand.vmem [shape: f32[1,32], index: 11, kind: input, shape index: {}]
  %s12 = inlined_call_operand.vmem [shape: bf16[32,128], index: 12, kind: input, shape index: {}]
  %s13 = inlined_call_operand.vmem [shape: f32[1,128], index: 13, kind: input, shape index: {}]
  %s14 = inlined_call_operand.vmem [shape: bf16[128,32], index: 14, kind: input, shape index: {}]
  %s15 = inlined_call_operand.vmem [shape: f32[1,32], index: 15, kind: input, shape index: {}]
  %s16 = inlined_call_operand.vmem [shape: f32[1,32], index: 16, kind: input, shape index: {}]
  %s17 = inlined_call_operand.vmem [shape: f32[1,32], index: 17, kind: input, shape index: {}]
  %s18 = inlined_call_operand.hbm [shape: f32[2,8,32], index: 18, kind: output, shape index: {}]
  %s19 = sld [smem:[#allocation0]]
  $region125: #{tpu_custom_call.1} parent=0
    _
  %s21 = ssub.s32 1, %s19
  %s22 = scalar_select 0, %s21, %s19
  $region1: #{tpu_custom_call.1} parent=0
    #allocation4 [shape = 'u8[512]{0}', space=vmem, size = 0x400, scoped, tag = 'input window, operand 4, single buffered']
    #allocation5 [shape = 's32[2]{0}', space=sflag, size = 0x8, scoped, tag = 'scoped memory for tpu_custom_call.1']
    #allocation6 [shape = 's32[2]{0}', space=sflag, size = 0x8, scoped, tag = 'scoped memory for tpu_custom_call.1']
    #allocation7 [shape = 'u8[512]{0}', space=vmem, size = 0x400, scoped, tag = 'input window, operand 6, single buffered']
    #allocation8 [shape = 's32[1]{0}', space=sflag, size = 0x4, scoped, tag = 'scoped memory for tpu_custom_call.1']
    #allocation9 [shape = 'u8[8192]{0}', space=vmem, size = 0x2000, scoped, tag = 'input window, operand 8, single buffered']
    #allocation10 [shape = 'u8[512]{0}', space=vmem, size = 0x400, scoped, tag = 'input window, operand 9, single buffered']
    #allocation11 [shape = 's32[1]{0}', space=sflag, size = 0x4, scoped, tag = 'scoped memory for tpu_custom_call.1']
    #allocation12 [shape = 'u8[8192]{0}', space=vmem, size = 0x2000, scoped, tag = 'output window, operand 0']
    %23 = vsyncpa [#allocation5], 0
    %24 = vsyncpa [#allocation8], 0
    %25 = vsyncpa [#allocation11], 0
    %26 = vsyncpa [#allocation6], 0
    %s27 = scalar_lea.sflag [#allocation6], 1
    %28 = vsyncpa %s27, 0
    loop: start=0, step=1, limit=4
    $region2: #{tpu_custom_call.1} parent=1 // loop_pre_header
      _
    $region3: #{tpu_custom_call.1} parent=1 // loop_header
      %s30 = sphi 0, %s34
      %p31 = scmp.ge.s32.totalorder %s30, 4
      %s37 = sphi 0, %s49
      %s38 = sphi 0, %s45
      %s39 = sphi 0, %s37
      %s40 = sphi 0, %s38
      %s41 = sphi 0, %s39
      %s42 = sphi 0, %s40
      %s52 = sphi 0, %s54
      %s55 = sphi 0, %s52
      %s56 = sphi 0, %s55
      %s72 = sphi 0, %s56
      %s78 = sphi 0, %s80
      %s81 = sphi 0, %s78
      %s82 = sphi 0, %s81
      %s98 = sphi 0, %s82
      %s104 = sphi 0, %s106
      %s107 = sphi 0, %s104
      %s108 = sphi 0, %s107
      %s124 = sphi 0, %s108
      %s128 = sphi 0, %s128
      %s130 = sphi 0, %s128
      %s131 = sphi 0, %s130
      %s145 = sphi 0, %s131
      %s149 = sphi 0, %s149
      %s151 = sphi 0, %s149
      %s152 = sphi 0, %s151
      %s166 = sphi 0, %s152
      %s170 = sphi 0, %s170
      %s172 = sphi 0, %s170
      %s173 = sphi 0, %s172
      %s187 = sphi 0, %s173
      %s191 = sphi 0, %s191
      %s193 = sphi 0, %s191
      %s194 = sphi 0, %s193
      %s208 = sphi 0, %s194
      %s212 = sphi 0, %s212
      %s214 = sphi 0, %s212
      %s215 = sphi 0, %s214
      %s229 = sphi 0, %s215
      %s233 = sphi 0, %s233
      %s235 = sphi 0, %s233
      %s236 = sphi 0, %s235
      %s250 = sphi 0, %s236
      %s254 = sphi 0, %s254
      %s256 = sphi 0, %s254
      %s257 = sphi 0, %s256
      %s271 = sphi 0, %s257
      %s275 = sphi 0, %s275
      %s277 = sphi 0, %s275
      %s278 = sphi 0, %s277
      %s292 = sphi 0, %s278
      %s296 = sphi 0, %s296
      %s298 = sphi 0, %s296
      %s299 = sphi 0, %s298
      %s313 = sphi 0, %s299
      %s317 = sphi 0, %s317
      %s319 = sphi 0, %s317
      %s320 = sphi 0, %s319
      %s334 = sphi 0, %s320
      %s338 = sphi 0, %s338
      %s340 = sphi 0, %s338
      %s341 = sphi 0, %s340
      %s355 = sphi 0, %s341
      %s359 = sphi 0, %s359
      %s361 = sphi 0, %s359
      %s362 = sphi 0, %s361
      %s376 = sphi 0, %s362
      %s380 = sphi 0, %s380
      %s382 = sphi 0, %s380
      %s383 = sphi 0, %s382
      %s397 = sphi 0, %s383
      %s401 = sphi 0, %s401
      %s403 = sphi 0, %s401
      %s404 = sphi 0, %s403
      %s418 = sphi 0, %s404
      %s422 = sphi 0, %s422
      %s424 = sphi 0, %s422
      %s425 = sphi 0, %s424
      %s439 = sphi 0, %s425
      %s447 = sphi 0, %s449
      %s450 = sphi 0, %s447
      %s451 = sphi 0, %s450
      %s467 = sphi 0, %s451
    $region4: #{tpu_custom_call.1} parent=1 // loop_header_branch
      %33 = sbr.rel (%p31) target = $region8
    $region5: #{tpu_custom_call.1} parent=1 // loop_body
      %s35 = ssub.s32 %s30, 1
      %s36 = ssub.s32 %s30, 2
      %s43 = sadd.s32 1, %s38
      %p44 = scmp.ge.s32.totalorder %s43, 1
      %s45 = scalar_select %p44, 0, %s43
      %s46 = sadd.s32 1, %s37
      %s47 = scalar_select %p44, %s46, %s37
      %p48 = scmp.ge.s32.totalorder %s47, 2
      %s49 = scalar_select %p48, 0, %s47
      %s50 = ssub.s32 %s37, %s49
      %p51 = scmp.eq.s32.totalorder %s50, 0
      %s53 = sadd.s32 %s52, 1
      %s54 = scalar_select %p51, %s52, %s53
      %p57 = pneg %p51
      %p58 = scmp.eq.s32.totalorder %s30, 1
      %p59 = por %p57, %p58
      %p60 = scmp.ne.s32.totalorder %s52, %s55
      %p61 = scmp.eq.s32.totalorder %s30, 0
      %p62 = por %p60, %p61
      %p63 = scmp.ne.s32.totalorder %s52, %s55
      %p64 = scmp.eq.s32.totalorder %s35, 1
      %p65 = por %p63, %p64
      %p66 = scmp.ne.s32.totalorder %s55, %s56
      %p67 = scmp.eq.s32.totalorder %s35, 0
      %p68 = por %p66, %p67
      %p69 = scmp.ne.s32.totalorder %s55, %s56
      %p70 = scmp.eq.s32.totalorder %s36, 1
      %p71 = por %p69, %p70
      %p73 = scmp.ne.s32.totalorder %s56, %s72
      %p74 = scmp.eq.s32.totalorder %s36, 0
      %p75 = por %p73, %p74
      %s76 = ssub.s32 %s37, %s49
      %p77 = scmp.eq.s32.totalorder %s76, 0
      %s79 = sadd.s32 %s78, 1
      %s80 = scalar_select %p77, %s78, %s79
      %p83 = pneg %p77
      %p84 = scmp.eq.s32.totalorder %s30, 1
      %p85 = por %p83, %p84
      %p86 = scmp.ne.s32.totalorder %s78, %s81
      %p87 = scmp.eq.s32.totalorder %s30, 0
      %p88 = por %p86, %p87
      %p89 = scmp.ne.s32.totalorder %s78, %s81
      %p90 = scmp.eq.s32.totalorder %s35, 1
      %p91 = por %p89, %p90
      %p92 = scmp.ne.s32.totalorder %s81, %s82
      %p93 = scmp.eq.s32.totalorder %s35, 0
      %p94 = por %p92, %p93
      %p95 = scmp.ne.s32.totalorder %s81, %s82
      %p96 = scmp.eq.s32.totalorder %s36, 1
      %p97 = por %p95, %p96
      %p99 = scmp.ne.s32.totalorder %s82, %s98
      %p100 = scmp.eq.s32.totalorder %s36, 0
      %p101 = por %p99, %p100
      %s102 = ssub.s32 %s37, %s49
      %p103 = scmp.eq.s32.totalorder %s102, 0
      %s105 = sadd.s32 %s104, 1
      %s106 = scalar_select %p103, %s104, %s105
      %p109 = pneg %p103
      %p110 = scmp.eq.s32.totalorder %s30, 1
      %p111 = por %p109, %p110
      %p112 = scmp.ne.s32.totalorder %s104, %s107
      %p113 = scmp.eq.s32.totalorder %s30, 0
      %p114 = por %p112, %p113
      %p115 = scmp.ne.s32.totalorder %s104, %s107
      %p116 = scmp.eq.s32.totalorder %s35, 1
      %p117 = por %p115, %p116
      %p118 = scmp.ne.s32.totalorder %s107, %s108
      %p119 = scmp.eq.s32.totalorder %s35, 0
      %p120 = por %p118, %p119
      %p121 = scmp.ne.s32.totalorder %s107, %s108
      %p122 = scmp.eq.s32.totalorder %s36, 1
      %p123 = por %p121, %p122
      %p125 = scmp.ne.s32.totalorder %s108, %s124
      %p126 = scmp.eq.s32.totalorder %s36, 0
      %p127 = por %p125, %p126
      %s129 = sadd.s32 %s128, 1
      %p132 = scmp.eq.s32.totalorder %s30, 1
      %p133 = scmp.ne.s32.totalorder %s128, %s130
      %p134 = scmp.eq.s32.totalorder %s30, 0
      %p135 = por %p133, %p134
      %p136 = scmp.ne.s32.totalorder %s128, %s130
      %p137 = scmp.eq.s32.totalorder %s35, 1
      %p138 = por %p136, %p137
      %p139 = scmp.ne.s32.totalorder %s130, %s131
      %p140 = scmp.eq.s32.totalorder %s35, 0
      %p141 = por %p139, %p140
      %p142 = scmp.ne.s32.totalorder %s130, %s131
      %p143 = scmp.eq.s32.totalorder %s36, 1
      %p144 = por %p142, %p143
      %p146 = scmp.ne.s32.totalorder %s131, %s145
      %p147 = scmp.eq.s32.totalorder %s36, 0
      %p148 = por %p146, %p147
      %s150 = sadd.s32 %s149, 1
      %p153 = scmp.eq.s32.totalorder %s30, 1
      %p154 = scmp.ne.s32.totalorder %s149, %s151
      %p155 = scmp.eq.s32.totalorder %s30, 0
      %p156 = por %p154, %p155
      %p157 = scmp.ne.s32.totalorder %s149, %s151
      %p158 = scmp.eq.s32.totalorder %s35, 1
      %p159 = por %p157, %p158
      %p160 = scmp.ne.s32.totalorder %s151, %s152
      %p161 = scmp.eq.s32.totalorder %s35, 0
      %p162 = por %p160, %p161
      %p163 = scmp.ne.s32.totalorder %s151, %s152
      %p164 = scmp.eq.s32.totalorder %s36, 1
      %p165 = por %p163, %p164
      %p167 = scmp.ne.s32.totalorder %s152, %s166
      %p168 = scmp.eq.s32.totalorder %s36, 0
      %p169 = por %p167, %p168
      %s171 = sadd.s32 %s170, 1
      %p174 = scmp.eq.s32.totalorder %s30, 1
      %p175 = scmp.ne.s32.totalorder %s170, %s172
      %p176 = scmp.eq.s32.totalorder %s30, 0
      %p177 = por %p175, %p176
      %p178 = scmp.ne.s32.totalorder %s170, %s172
      %p179 = scmp.eq.s32.totalorder %s35, 1
      %p180 = por %p178, %p179
      %p181 = scmp.ne.s32.totalorder %s172, %s173
      %p182 = scmp.eq.s32.totalorder %s35, 0
      %p183 = por %p181, %p182
      %p184 = scmp.ne.s32.totalorder %s172, %s173
      %p185 = scmp.eq.s32.totalorder %s36, 1
      %p186 = por %p184, %p185
      %p188 = scmp.ne.s32.totalorder %s173, %s187
      %p189 = scmp.eq.s32.totalorder %s36, 0
      %p190 = por %p188, %p189
      %s192 = sadd.s32 %s191, 1
      %p195 = scmp.eq.s32.totalorder %s30, 1
      %p196 = scmp.ne.s32.totalorder %s191, %s193
      %p197 = scmp.eq.s32.totalorder %s30, 0
      %p198 = por %p196, %p197
      %p199 = scmp.ne.s32.totalorder %s191, %s193
      %p200 = scmp.eq.s32.totalorder %s35, 1
      %p201 = por %p199, %p200
      %p202 = scmp.ne.s32.totalorder %s193, %s194
      %p203 = scmp.eq.s32.totalorder %s35, 0
      %p204 = por %p202, %p203
      %p205 = scmp.ne.s32.totalorder %s193, %s194
      %p206 = scmp.eq.s32.totalorder %s36, 1
      %p207 = por %p205, %p206
      %p209 = scmp.ne.s32.totalorder %s194, %s208
      %p210 = scmp.eq.s32.totalorder %s36, 0
      %p211 = por %p209, %p210
      %s213 = sadd.s32 %s212, 1
      %p216 = scmp.eq.s32.totalorder %s30, 1
      %p217 = scmp.ne.s32.totalorder %s212, %s214
      %p218 = scmp.eq.s32.totalorder %s30, 0
      %p219 = por %p217, %p218
      %p220 = scmp.ne.s32.totalorder %s212, %s214
      %p221 = scmp.eq.s32.totalorder %s35, 1
      %p222 = por %p220, %p221
      %p223 = scmp.ne.s32.totalorder %s214, %s215
      %p224 = scmp.eq.s32.totalorder %s35, 0
      %p225 = por %p223, %p224
      %p226 = scmp.ne.s32.totalorder %s214, %s215
      %p227 = scmp.eq.s32.totalorder %s36, 1
      %p228 = por %p226, %p227
      %p230 = scmp.ne.s32.totalorder %s215, %s229
      %p231 = scmp.eq.s32.totalorder %s36, 0
      %p232 = por %p230, %p231
      %s234 = sadd.s32 %s233, 1
      %p237 = scmp.eq.s32.totalorder %s30, 1
      %p238 = scmp.ne.s32.totalorder %s233, %s235
      %p239 = scmp.eq.s32.totalorder %s30, 0
      %p240 = por %p238, %p239
      %p241 = scmp.ne.s32.totalorder %s233, %s235
      %p242 = scmp.eq.s32.totalorder %s35, 1
      %p243 = por %p241, %p242
      %p244 = scmp.ne.s32.totalorder %s235, %s236
      %p245 = scmp.eq.s32.totalorder %s35, 0
      %p246 = por %p244, %p245
      %p247 = scmp.ne.s32.totalorder %s235, %s236
      %p248 = scmp.eq.s32.totalorder %s36, 1
      %p249 = por %p247, %p248
      %p251 = scmp.ne.s32.totalorder %s236, %s250
      %p252 = scmp.eq.s32.totalorder %s36, 0
      %p253 = por %p251, %p252
      %s255 = sadd.s32 %s254, 1
      %p258 = scmp.eq.s32.totalorder %s30, 1
      %p259 = scmp.ne.s32.totalorder %s254, %s256
      %p260 = scmp.eq.s32.totalorder %s30, 0
      %p261 = por %p259, %p260
      %p262 = scmp.ne.s32.totalorder %s254, %s256
      %p263 = scmp.eq.s32.totalorder %s35, 1
      %p264 = por %p262, %p263
      %p265 = scmp.ne.s32.totalorder %s256, %s257
      %p266 = scmp.eq.s32.totalorder %s35, 0
      %p267 = por %p265, %p266
      %p268 = scmp.ne.s32.totalorder %s256, %s257
      %p269 = scmp.eq.s32.totalorder %s36, 1
      %p270 = por %p268, %p269
      %p272 = scmp.ne.s32.totalorder %s257, %s271
      %p273 = scmp.eq.s32.totalorder %s36, 0
      %p274 = por %p272, %p273
      %s276 = sadd.s32 %s275, 1
      %p279 = scmp.eq.s32.totalorder %s30, 1
      %p280 = scmp.ne.s32.totalorder %s275, %s277
      %p281 = scmp.eq.s32.totalorder %s30, 0
      %p282 = por %p280, %p281
      %p283 = scmp.ne.s32.totalorder %s275, %s277
      %p284 = scmp.eq.s32.totalorder %s35, 1
      %p285 = por %p283, %p284
      %p286 = scmp.ne.s32.totalorder %s277, %s278
      %p287 = scmp.eq.s32.totalorder %s35, 0
      %p288 = por %p286, %p287
      %p289 = scmp.ne.s32.totalorder %s277, %s278
      %p290 = scmp.eq.s32.totalorder %s36, 1
      %p291 = por %p289, %p290
      %p293 = scmp.ne.s32.totalorder %s278, %s292
      %p294 = scmp.eq.s32.totalorder %s36, 0
      %p295 = por %p293, %p294
      %s297 = sadd.s32 %s296, 1
      %p300 = scmp.eq.s32.totalorder %s30, 1
      %p301 = scmp.ne.s32.totalorder %s296, %s298
      %p302 = scmp.eq.s32.totalorder %s30, 0
      %p303 = por %p301, %p302
      %p304 = scmp.ne.s32.totalorder %s296, %s298
      %p305 = scmp.eq.s32.totalorder %s35, 1
      %p306 = por %p304, %p305
      %p307 = scmp.ne.s32.totalorder %s298, %s299
      %p308 = scmp.eq.s32.totalorder %s35, 0
      %p309 = por %p307, %p308
      %p310 = scmp.ne.s32.totalorder %s298, %s299
      %p311 = scmp.eq.s32.totalorder %s36, 1
      %p312 = por %p310, %p311
      %p314 = scmp.ne.s32.totalorder %s299, %s313
      %p315 = scmp.eq.s32.totalorder %s36, 0
      %p316 = por %p314, %p315
      %s318 = sadd.s32 %s317, 1
      %p321 = scmp.eq.s32.totalorder %s30, 1
      %p322 = scmp.ne.s32.totalorder %s317, %s319
      %p323 = scmp.eq.s32.totalorder %s30, 0
      %p324 = por %p322, %p323
      %p325 = scmp.ne.s32.totalorder %s317, %s319
      %p326 = scmp.eq.s32.totalorder %s35, 1
      %p327 = por %p325, %p326
      %p328 = scmp.ne.s32.totalorder %s319, %s320
      %p329 = scmp.eq.s32.totalorder %s35, 0
      %p330 = por %p328, %p329
      %p331 = scmp.ne.s32.totalorder %s319, %s320
      %p332 = scmp.eq.s32.totalorder %s36, 1
      %p333 = por %p331, %p332
      %p335 = scmp.ne.s32.totalorder %s320, %s334
      %p336 = scmp.eq.s32.totalorder %s36, 0
      %p337 = por %p335, %p336
      %s339 = sadd.s32 %s338, 1
      %p342 = scmp.eq.s32.totalorder %s30, 1
      %p343 = scmp.ne.s32.totalorder %s338, %s340
      %p344 = scmp.eq.s32.totalorder %s30, 0
      %p345 = por %p343, %p344
      %p346 = scmp.ne.s32.totalorder %s338, %s340
      %p347 = scmp.eq.s32.totalorder %s35, 1
      %p348 = por %p346, %p347
      %p349 = scmp.ne.s32.totalorder %s340, %s341
      %p350 = scmp.eq.s32.totalorder %s35, 0
      %p351 = por %p349, %p350
      %p352 = scmp.ne.s32.totalorder %s340, %s341
      %p353 = scmp.eq.s32.totalorder %s36, 1
      %p354 = por %p352, %p353
      %p356 = scmp.ne.s32.totalorder %s341, %s355
      %p357 = scmp.eq.s32.totalorder %s36, 0
      %p358 = por %p356, %p357
      %s360 = sadd.s32 %s359, 1
      %p363 = scmp.eq.s32.totalorder %s30, 1
      %p364 = scmp.ne.s32.totalorder %s359, %s361
      %p365 = scmp.eq.s32.totalorder %s30, 0
      %p366 = por %p364, %p365
      %p367 = scmp.ne.s32.totalorder %s359, %s361
      %p368 = scmp.eq.s32.totalorder %s35, 1
      %p369 = por %p367, %p368
      %p370 = scmp.ne.s32.totalorder %s361, %s362
      %p371 = scmp.eq.s32.totalorder %s35, 0
      %p372 = por %p370, %p371
      %p373 = scmp.ne.s32.totalorder %s361, %s362
      %p374 = scmp.eq.s32.totalorder %s36, 1
      %p375 = por %p373, %p374
      %p377 = scmp.ne.s32.totalorder %s362, %s376
      %p378 = scmp.eq.s32.totalorder %s36, 0
      %p379 = por %p377, %p378
      %s381 = sadd.s32 %s380, 1
      %p384 = scmp.eq.s32.totalorder %s30, 1
      %p385 = scmp.ne.s32.totalorder %s380, %s382
      %p386 = scmp.eq.s32.totalorder %s30, 0
      %p387 = por %p385, %p386
      %p388 = scmp.ne.s32.totalorder %s380, %s382
      %p389 = scmp.eq.s32.totalorder %s35, 1
      %p390 = por %p388, %p389
      %p391 = scmp.ne.s32.totalorder %s382, %s383
      %p392 = scmp.eq.s32.totalorder %s35, 0
      %p393 = por %p391, %p392
      %p394 = scmp.ne.s32.totalorder %s382, %s383
      %p395 = scmp.eq.s32.totalorder %s36, 1
      %p396 = por %p394, %p395
      %p398 = scmp.ne.s32.totalorder %s383, %s397
      %p399 = scmp.eq.s32.totalorder %s36, 0
      %p400 = por %p398, %p399
      %s402 = sadd.s32 %s401, 1
      %p405 = scmp.eq.s32.totalorder %s30, 1
      %p406 = scmp.ne.s32.totalorder %s401, %s403
      %p407 = scmp.eq.s32.totalorder %s30, 0
      %p408 = por %p406, %p407
      %p409 = scmp.ne.s32.totalorder %s401, %s403
      %p410 = scmp.eq.s32.totalorder %s35, 1
      %p411 = por %p409, %p410
      %p412 = scmp.ne.s32.totalorder %s403, %s404
      %p413 = scmp.eq.s32.totalorder %s35, 0
      %p414 = por %p412, %p413
      %p415 = scmp.ne.s32.totalorder %s403, %s404
      %p416 = scmp.eq.s32.totalorder %s36, 1
      %p417 = por %p415, %p416
      %p419 = scmp.ne.s32.totalorder %s404, %s418
      %p420 = scmp.eq.s32.totalorder %s36, 0
      %p421 = por %p419, %p420
      %s423 = sadd.s32 %s422, 1
      %p426 = scmp.eq.s32.totalorder %s30, 1
      %p427 = scmp.ne.s32.totalorder %s422, %s424
      %p428 = scmp.eq.s32.totalorder %s30, 0
      %p429 = por %p427, %p428
      %p430 = scmp.ne.s32.totalorder %s422, %s424
      %p431 = scmp.eq.s32.totalorder %s35, 1
      %p432 = por %p430, %p431
      %p433 = scmp.ne.s32.totalorder %s424, %s425
      %p434 = scmp.eq.s32.totalorder %s35, 0
      %p435 = por %p433, %p434
      %p436 = scmp.ne.s32.totalorder %s424, %s425
      %p437 = scmp.eq.s32.totalorder %s36, 1
      %p438 = por %p436, %p437
      %p440 = scmp.ne.s32.totalorder %s425, %s439
      %p441 = scmp.eq.s32.totalorder %s36, 0
      %p442 = por %p440, %p441
      %s443 = ssub.s32 %s37, %s49
      %s444 = ssub.s32 %s38, %s45
      %s445 = sor.u32 %s443, %s444
      %p446 = scmp.eq.s32.totalorder %s445, 0
      %s448 = sadd.s32 %s447, 1
      %s449 = scalar_select %p446, %s447, %s448
      %p452 = pneg %p446
      %p453 = scmp.eq.s32.totalorder %s30, 1
      %p454 = por %p452, %p453
      %p455 = scmp.ne.s32.totalorder %s447, %s450
      %p456 = scmp.eq.s32.totalorder %s30, 0
      %p457 = por %p455, %p456
      %p458 = scmp.ne.s32.totalorder %s447, %s450
      %p459 = scmp.eq.s32.totalorder %s35, 1
      %p460 = por %p458, %p459
      %p461 = scmp.ne.s32.totalorder %s450, %s451
      %p462 = scmp.eq.s32.totalorder %s35, 0
      %p463 = por %p461, %p462
      %p464 = scmp.ne.s32.totalorder %s450, %s451
      %p465 = scmp.eq.s32.totalorder %s36, 1
      %p466 = por %p464, %p465
      %p468 = scmp.ne.s32.totalorder %s451, %s467
      %p469 = scmp.eq.s32.totalorder %s36, 0
      %p470 = por %p468, %p469
      %p471 = scmp.le.s32.totalorder 1, %s30
      %p472 = scmp.lt.s32.totalorder %s30, 3
      %p473 = pnand %p471, %p472
      %p474 = pneg %p473
      // Predicated region
      $region9: #{tpu_custom_call.1} parent=5 // pred_check
        _
      $region10: #{tpu_custom_call.1} parent=5 // pred_check_branch
        %476 = sbr.rel (%p473) target = $region12
      $region11: #{tpu_custom_call.1} parent=5 // pred_region
        %s477 = ssub.s32 %s30, 1
        // Predicated region
        $region13: #{tpu_custom_call.1} parent=11 // pred_check
          %p478 = pneg %p141
        $region14: #{tpu_custom_call.1} parent=11 // pred_check_branch
          %480 = sbr.rel (%p478) target = $region16
        $region15: #{tpu_custom_call.1} parent=11 // pred_region
          _
        $region16: #{tpu_custom_call.1} parent=11 // pred_fallthru
          _
        // Predicated region
        $region17: #{tpu_custom_call.1} parent=11 // pred_check
          %p481 = pneg %p162
        $region18: #{tpu_custom_call.1} parent=11 // pred_check_branch
          %483 = sbr.rel (%p481) target = $region20
        $region19: #{tpu_custom_call.1} parent=11 // pred_region
          %s485 = ssub.s32 16, 16
          %486 = vsyncadd [#allocation5], %s485
          %s488 = sshll.u32 [#allocation4], 4
          %s489 = int_to_ptr.vmem [resolvable:$true] %s488
          %491 = dma.hbm_to_vmem [thread:$0]  %s4, 16, %s489, [#allocation5]
        $region20: #{tpu_custom_call.1} parent=11 // pred_fallthru
          _
        // Predicated region
        $region21: #{tpu_custom_call.1} parent=11 // pred_check
          %p492 = pneg %p183
        $region22: #{tpu_custom_call.1} parent=11 // pred_check_branch
          %494 = sbr.rel (%p492) target = $region24
        $region23: #{tpu_custom_call.1} parent=11 // pred_region
          _
        $region24: #{tpu_custom_call.1} parent=11 // pred_fallthru
          _
        // Predicated region
        $region25: #{tpu_custom_call.1} parent=11 // pred_check
          %p495 = pneg %p204
        $region26: #{tpu_custom_call.1} parent=11 // pred_check_branch
          %497 = sbr.rel (%p495) target = $region28
        $region27: #{tpu_custom_call.1} parent=11 // pred_region
          %s499 = ssub.s32 16, 16
          %500 = vsyncadd [#allocation8], %s499
          %s502 = sshll.u32 [#allocation7], 4
          %s503 = int_to_ptr.vmem [resolvable:$true] %s502
          %505 = dma.hbm_to_vmem [thread:$0]  %s6, 16, %s503, [#allocation8]
        $region28: #{tpu_custom_call.1} parent=11 // pred_fallthru
          _
        // Predicated region
        $region29: #{tpu_custom_call.1} parent=11 // pred_check
          %p506 = pneg %p225
        $region30: #{tpu_custom_call.1} parent=11 // pred_check_branch
          %508 = sbr.rel (%p506) target = $region32
        $region31: #{tpu_custom_call.1} parent=11 // pred_region
          _
        $region32: #{tpu_custom_call.1} parent=11 // pred_fallthru
          _
        // Predicated region
        $region33: #{tpu_custom_call.1} parent=11 // pred_check
          %p509 = pneg %p246
        $region34: #{tpu_custom_call.1} parent=11 // pred_check_branch
          %511 = sbr.rel (%p509) target = $region36
        $region35: #{tpu_custom_call.1} parent=11 // pred_region
          %s513 = ssub.s32 256, 256
          %514 = vsyncadd [#allocation8], %s513
          %s515 = sshll.u32 [#allocation9], 4
          %s516 = int_to_ptr.vmem [resolvable:$true] %s515
          %521 = dma.hbm_to_vmem [thread:$0]  %s8, 256, %s516, [#allocation8], 64, 64, 4
        $region36: #{tpu_custom_call.1} parent=11 // pred_fallthru
          _
        // Predicated region
        $region37: #{tpu_custom_call.1} parent=11 // pred_check
          %p522 = pneg %p267
        $region38: #{tpu_custom_call.1} parent=11 // pred_check_branch
          %524 = sbr.rel (%p522) target = $region40
        $region39: #{tpu_custom_call.1} parent=11 // pred_region
          %s526 = ssub.s32 16, 16
          %527 = vsyncadd [#allocation11], %s526
          %s529 = sshll.u32 [#allocation10], 4
          %s530 = int_to_ptr.vmem [resolvable:$true] %s529
          %532 = dma.hbm_to_vmem [thread:$0]  %s9, 16, %s530, [#allocation11]
        $region40: #{tpu_custom_call.1} parent=11 // pred_fallthru
          _
        // Predicated region
        $region41: #{tpu_custom_call.1} parent=11 // pred_check
          %p533 = pneg %p288
        $region42: #{tpu_custom_call.1} parent=11 // pred_check_branch
          %535 = sbr.rel (%p533) target = $region44
        $region43: #{tpu_custom_call.1} parent=11 // pred_region
          _
        $region44: #{tpu_custom_call.1} parent=11 // pred_fallthru
          _
        // Predicated region
        $region45: #{tpu_custom_call.1} parent=11 // pred_check
          %p536 = pneg %p309
        $region46: #{tpu_custom_call.1} parent=11 // pred_check_branch
          %538 = sbr.rel (%p536) target = $region48
        $region47: #{tpu_custom_call.1} parent=11 // pred_region
          _
        $region48: #{tpu_custom_call.1} parent=11 // pred_fallthru
          _
        // Predicated region
        $region49: #{tpu_custom_call.1} parent=11 // pred_check
          %p539 = pneg %p330
        $region50: #{tpu_custom_call.1} parent=11 // pred_check_branch
          %541 = sbr.rel (%p539) target = $region52
        $region51: #{tpu_custom_call.1} parent=11 // pred_region
          _
        $region52: #{tpu_custom_call.1} parent=11 // pred_fallthru
          _
        // Predicated region
        $region53: #{tpu_custom_call.1} parent=11 // pred_check
          %p542 = pneg %p351
        $region54: #{tpu_custom_call.1} parent=11 // pred_check_branch
          %544 = sbr.rel (%p542) target = $region56
        $region55: #{tpu_custom_call.1} parent=11 // pred_region
          _
        $region56: #{tpu_custom_call.1} parent=11 // pred_fallthru
          _
        // Predicated region
        $region57: #{tpu_custom_call.1} parent=11 // pred_check
          %p545 = pneg %p372
        $region58: #{tpu_custom_call.1} parent=11 // pred_check_branch
          %547 = sbr.rel (%p545) target = $region60
        $region59: #{tpu_custom_call.1} parent=11 // pred_region
          _
        $region60: #{tpu_custom_call.1} parent=11 // pred_fallthru
          _
        // Predicated region
        $region61: #{tpu_custom_call.1} parent=11 // pred_check
          %p548 = pneg %p393
        $region62: #{tpu_custom_call.1} parent=11 // pred_check_branch
          %550 = sbr.rel (%p548) target = $region64
        $region63: #{tpu_custom_call.1} parent=11 // pred_region
          _
        $region64: #{tpu_custom_call.1} parent=11 // pred_fallthru
          _
        // Predicated region
        $region65: #{tpu_custom_call.1} parent=11 // pred_check
          %p551 = pneg %p414
        $region66: #{tpu_custom_call.1} parent=11 // pred_check_branch
          %553 = sbr.rel (%p551) target = $region68
        $region67: #{tpu_custom_call.1} parent=11 // pred_region
          _
        $region68: #{tpu_custom_call.1} parent=11 // pred_fallthru
          _
        // Predicated region
        $region69: #{tpu_custom_call.1} parent=11 // pred_check
          %p554 = pneg %p435
        $region70: #{tpu_custom_call.1} parent=11 // pred_check_branch
          %556 = sbr.rel (%p554) target = $region72
        $region71: #{tpu_custom_call.1} parent=11 // pred_region
          _
        $region72: #{tpu_custom_call.1} parent=11 // pred_fallthru
          _
      $region12: #{tpu_custom_call.1} parent=5 // pred_fallthru
        _
      %p557 = scmp.lt.s32.totalorder %s30, 2
      // Predicated region
      $region73: #{tpu_custom_call.1} parent=5 // pred_check
        %p558 = pneg %p557
      $region74: #{tpu_custom_call.1} parent=5 // pred_check_branch
        %560 = sbr.rel (%p558) target = $region76
      $region75: #{tpu_custom_call.1} parent=5 // pred_region
        // Predicated region
        $region77: #{tpu_custom_call.1} parent=75 // pred_check
          %p561 = pneg %p62
        $region78: #{tpu_custom_call.1} parent=75 // pred_check_branch
          %563 = sbr.rel (%p561) target = $region80
        $region79: #{tpu_custom_call.1} parent=75 // pred_region
          %p564 = scmp.lt.s32.totalorder %s37, 1
          %s565 = scalar_select %p564, %s37, 1
          %s566 = smul.addr %s565, 8
          %s567 = scalar_lea.vmem %s0, %s566
        $region80: #{tpu_custom_call.1} parent=75 // pred_fallthru
          _
        // Predicated region
        $region81: #{tpu_custom_call.1} parent=75 // pred_check
          %p568 = pneg %p88
        $region82: #{tpu_custom_call.1} parent=75 // pred_check_branch
          %570 = sbr.rel (%p568) target = $region84
        $region83: #{tpu_custom_call.1} parent=75 // pred_region
          %p571 = scmp.lt.s32.totalorder %s37, 1
          %s572 = scalar_select %p571, %s37, 1
          %s573 = smul.addr %s572, 8
          %s574 = scalar_lea.vmem %s1, %s573
        $region84: #{tpu_custom_call.1} parent=75 // pred_fallthru
          _
        // Predicated region
        $region85: #{tpu_custom_call.1} parent=75 // pred_check
          %p575 = pneg %p114
        $region86: #{tpu_custom_call.1} parent=75 // pred_check_branch
          %577 = sbr.rel (%p575) target = $region88
        $region87: #{tpu_custom_call.1} parent=75 // pred_region
          %p578 = scmp.lt.s32.totalorder %s37, 1
          %s579 = scalar_select %p578, %s37, 1
          %s580 = scalar_lea.vmem %s2, %s579
        $region88: #{tpu_custom_call.1} parent=75 // pred_fallthru
          _
      $region76: #{tpu_custom_call.1} parent=5 // pred_fallthru
        _
      %p581 = scmp.le.s32.totalorder 1, %s30
      %p582 = scmp.lt.s32.totalorder %s30, 3
      %p583 = pnand %p581, %p582
      %p584 = pneg %p583
      // Predicated region
      $region89: #{tpu_custom_call.1} parent=5 // pred_check
        _
      $region90: #{tpu_custom_call.1} parent=5 // pred_check_branch
        %586 = sbr.rel (%p583) target = $region92
      $region91: #{tpu_custom_call.1} parent=5 // pred_region
        %s587 = ssub.s32 %s30, 1
        // Predicated region
        $region93: #{tpu_custom_call.1} parent=91 // pred_check
          %p588 = pneg %p162
        $region94: #{tpu_custom_call.1} parent=91 // pred_check_branch
          %590 = sbr.rel (%p588) target = $region96
        $region95: #{tpu_custom_call.1} parent=91 // pred_region
          %591 = dma.done [#allocation5], 16
        $region96: #{tpu_custom_call.1} parent=91 // pred_fallthru
          _
        // Predicated region
        $region97: #{tpu_custom_call.1} parent=91 // pred_check
          %p592 = pneg %p204
        $region98: #{tpu_custom_call.1} parent=91 // pred_check_branch
          %594 = sbr.rel (%p592) target = $region100
        $region99: #{tpu_custom_call.1} parent=91 // pred_region
          %595 = dma.done [#allocation8], 16
        $region100: #{tpu_custom_call.1} parent=91 // pred_fallthru
          _
        // Predicated region
        $region101: #{tpu_custom_call.1} parent=91 // pred_check
          %p596 = pneg %p246
        $region102: #{tpu_custom_call.1} parent=91 // pred_check_branch
          %598 = sbr.rel (%p596) target = $region104
        $region103: #{tpu_custom_call.1} parent=91 // pred_region
          %599 = dma.done [#allocation8], 256
        $region104: #{tpu_custom_call.1} parent=91 // pred_fallthru
          _
        // Predicated region
        $region105: #{tpu_custom_call.1} parent=91 // pred_check
          %p600 = pneg %p267
        $region106: #{tpu_custom_call.1} parent=91 // pred_check_branch
          %602 = sbr.rel (%p600) target = $region108
        $region107: #{tpu_custom_call.1} parent=91 // pred_region
          %603 = dma.done [#allocation11], 16
        $region108: #{tpu_custom_call.1} parent=91 // pred_fallthru
          _
        %p604 = scmp.lt.s32.totalorder %s39, 1
        %s605 = scalar_select %p604, %s39, 1
        %s606 = smul.addr %s605, 8
        %s607 = scalar_lea.vmem %s0, %s606
        %p608 = pneg %p68
        %p609 = pneg %p65
        %p610 = scmp.lt.s32.totalorder %s39, 1
        %s611 = scalar_select %p610, %s39, 1
        %s612 = smul.addr %s611, 8
        %s613 = scalar_lea.vmem %s1, %s612
        %p614 = pneg %p94
        %p615 = pneg %p91
        %p616 = scmp.lt.s32.totalorder %s39, 1
        %s617 = scalar_select %p616, %s39, 1
        %s618 = scalar_lea.vmem %s2, %s617
        %p619 = pneg %p120
        %p620 = pneg %p117
        %p621 = pneg %p141
        %p622 = pneg %p138
        %p623 = pneg %p162
        %p624 = pneg %p159
        %p625 = pneg %p183
        %p626 = pneg %p180
        %p627 = pneg %p204
        %p628 = pneg %p201
        %p629 = pneg %p225
        %p630 = pneg %p222
        %p631 = pneg %p246
        %p632 = pneg %p243
        %p633 = pneg %p267
        %p634 = pneg %p264
        %p635 = pneg %p288
        %p636 = pneg %p285
        %p637 = pneg %p309
        %p638 = pneg %p306
        %p639 = pneg %p330
        %p640 = pneg %p327
        %p641 = pneg %p351
        %p642 = pneg %p348
        %p643 = pneg %p372
        %p644 = pneg %p369
        %p645 = pneg %p393
        %p646 = pneg %p390
        %p647 = pneg %p414
        %p648 = pneg %p411
        %p649 = pneg %p435
        %p650 = pneg %p432
        %p651 = pneg %p463
        %p652 = pneg %p460
        %s653 = sand.u32 %s450, 1
        %s654 = scalar_lea.sflag [#allocation6], %s653
        %s655 = sand.u32 %s450, 1
        %s656 = smul.addr %s655, 8
        %s657 = scalar_lea.vmem [#allocation12], %s656
        %p658 = scmp.lt.s32.totalorder %s39, 1
        %s659 = scalar_select %p658, %s39, 1
        %s660 = smul.addr %s659, 8
        %s661 = scalar_lea.vmem %s0, %s660
        %p662 = scmp.lt.s32.totalorder %s39, 1
        %s663 = scalar_select %p662, %s39, 1
        %s664 = smul.addr %s663, 8
        %s665 = scalar_lea.vmem %s1, %s664
        %p666 = scmp.lt.s32.totalorder %s39, 1
        %s667 = scalar_select %p666, %s39, 1
        %s668 = scalar_lea.vmem %s2, %s667
        %s670 = smul.u32 %s40, 8
        %p671 = scmp.eq.s32.totalorder %s40, 0
        // Predicated region
        $region109: #{tpu_custom_call.1} parent=91 // pred_check
          %p672 = pneg %p671
        $region110: #{tpu_custom_call.1} parent=91 // pred_check_branch
          %674 = sbr.rel (%p672) target = $region112
        $region111: #{tpu_custom_call.1} parent=91 // pred_region
          %v675 = vld [vmem:[%s661] sm:$0xff]
          %v676 = vpack.c.bf16 %v675, %v675
          %v677 = vld [vmem:[%s5] sm:$0xf]
          %v678 = vld [vmem:[%s5 + $0x4] sm:$0xf]
          %v679 = vld [vmem:[%s5 + $0x8] sm:$0xf]
          %v680 = vld [vmem:[%s5 + $0xc] sm:$0xf]
          %v681 = vld [vmem:[%s665] sm:$0xff]
          %v682 = vpack.c.bf16 %v681, %v681
          %v683 = vld [vmem:[%s7] sm:$0xf]
          %v684 = vld [vmem:[%s7 + $0x4] sm:$0xf]
          %v685 = vld [vmem:[%s7 + $0x8] sm:$0xf]
          %v686 = vld [vmem:[%s7 + $0xc] sm:$0xf]
          %v691 = vunpack.c.l.b16 %v683
          %v692 = vunpack.c.l.b16 %v684
          %v693 = vunpack.c.l.b16 %v685
          %v694 = vunpack.c.l.b16 %v686
          %v695 = vpack.c.b16 %v692, %v691
          %v696 = vpack.c.b16 %v694, %v693
          %vm699 = vcmask 261120
          %v701 = vsel %vm699, %v682, 0
          %703 = vmatprep.subr.bf16.mxu0 0
          %704 = vmatpush1.bf16.msra.mxu0 %v695
          %705 = vmatprep.subr.bf16.mxu0 0
          %706 = vmatpush1.bf16.msra.mxu0 %v696
          %707 = vmatprep.subr.bf16.mxu0 0
          %708 = vmatpush1.bf16.msra.mxu0 0
          %709 = vmatprep.subr.bf16.mxu0 0
          %710 = vmatpush1.bf16.msra.mxu0 0
          %711 = vmatprep.subr.bf16.mxu0 0
          %712 = vmatpush1.bf16.msra.mxu0 0
          %713 = vmatprep.subr.bf16.mxu0 0
          %714 = vmatpush1.bf16.msra.mxu0 0
          %715 = vmatprep.subr.bf16.mxu0 0
          %716 = vmatpush1.bf16.msra.mxu0 0
          %717 = vmatprep.subr.bf16.mxu0 0
          %718 = vmatpush1.bf16.msra.mxu0 0
          %719 = vmatprep.subr.bf16.mxu0 0
          %720 = vmatpush1.bf16.msra.mxu0 0
          %721 = vmatprep.subr.bf16.mxu0 0
          %722 = vmatpush1.bf16.msra.mxu0 0
          %723 = vmatprep.subr.bf16.mxu0 0
          %724 = vmatpush1.bf16.msra.mxu0 0
          %725 = vmatprep.subr.bf16.mxu0 0
          %726 = vmatpush1.bf16.msra.mxu0 0
          %727 = vmatprep.subr.bf16.mxu0 0
          %728 = vmatpush1.bf16.msra.mxu0 0
          %729 = vmatprep.subr.bf16.mxu0 0
          %730 = vmatpush1.bf16.msra.mxu0 0
          %731 = vmatprep.subr.bf16.mxu0 0
          %732 = vmatpush1.bf16.msra.mxu0 0
          %733 = vmatprep.subr.bf16.mxu0 0
          %734 = vmatpush1.bf16.msra.mxu0 0
          %735 = vmatprep.mubr.bf16.mxu0 0
          %736 = vmatmul.mubr.bf16.gmra.mrb[0].mxu0 %v701
          %v737 = vpop.f32.mrb[0].mxu0
          %v738 = vadd.f32 0.0, %v737
          %v739 = vpop.f32.mrb[0].mxu0
          %v740 = vpop.f32.mrb[0].mxu0
          %v741 = vpop.f32.mrb[0].mxu0
          %742 = vdwg.mxu0
          %v747 = vunpack.c.l.b16 %v677
          %v748 = vunpack.c.l.b16 %v678
          %v749 = vunpack.c.l.b16 %v679
          %v750 = vunpack.c.l.b16 %v680
          %v751 = vpack.c.b16 %v748, %v747
          %v752 = vpack.c.b16 %v750, %v749
          %v756 = vsel %vm699, %v676, 0
          %758 = vmatprep.subr.bf16.mxu0 0
          %759 = vmatpush1.bf16.msra.mxu0 %v751
          %760 = vmatprep.subr.bf16.mxu0 0
          %761 = vmatpush1.bf16.msra.mxu0 %v752
          %762 = vmatprep.subr.bf16.mxu0 0
          %763 = vmatpush1.bf16.msra.mxu0 0
          %764 = vmatprep.subr.bf16.mxu0 0
          %765 = vmatpush1.bf16.msra.mxu0 0
          %766 = vmatprep.subr.bf16.mxu0 0
          %767 = vmatpush1.bf16.msra.mxu0 0
          %768 = vmatprep.subr.bf16.mxu0 0
          %769 = vmatpush1.bf16.msra.mxu0 0
          %770 = vmatprep.subr.bf16.mxu0 0
          %771 = vmatpush1.bf16.msra.mxu0 0
          %772 = vmatprep.subr.bf16.mxu0 0
          %773 = vmatpush1.bf16.msra.mxu0 0
          %774 = vmatprep.subr.bf16.mxu0 0
          %775 = vmatpush1.bf16.msra.mxu0 0
          %776 = vmatprep.subr.bf16.mxu0 0
          %777 = vmatpush1.bf16.msra.mxu0 0
          %778 = vmatprep.subr.bf16.mxu0 0
          %779 = vmatpush1.bf16.msra.mxu0 0
          %780 = vmatprep.subr.bf16.mxu0 0
          %781 = vmatpush1.bf16.msra.mxu0 0
          %782 = vmatprep.subr.bf16.mxu0 0
          %783 = vmatpush1.bf16.msra.mxu0 0
          %784 = vmatprep.subr.bf16.mxu0 0
          %785 = vmatpush1.bf16.msra.mxu0 0
          %786 = vmatprep.subr.bf16.mxu0 0
          %787 = vmatpush1.bf16.msra.mxu0 0
          %788 = vmatprep.subr.bf16.mxu0 0
          %789 = vmatpush1.bf16.msra.mxu0 0
          %790 = vmatprep.mubr.bf16.mxu0 0
          %791 = vmatmul.mubr.bf16.gmra.mrb[0].mxu0 %v756
          %v792 = vpop.f32.mrb[0].mxu0
          %v793 = vadd.f32 %v738, %v792
          %v794 = vpop.f32.mrb[0].mxu0
          %v795 = vpop.f32.mrb[0].mxu0
          %v796 = vpop.f32.mrb[0].mxu0
          %797 = vdwg.mxu0
          %v798 = vld [vmem:[#allocation7] sm:$0x1]
          %v800 = vlaneseq
          %v801 = vshrl.u32 %v800, 7
          %v802 = vsub.s32 0, %v801
          %v803 = vrot.slane %v798, %v802
          %v805 = vadd.f32 %v793, %v803
          %v806 = vpack.c.bf16 %v805, %v805
          %vm807 = vcmask 519168
          %808 = vst.msk [vmem:[#allocation2] sm:$0xf] %vm807, %v806
        $region112: #{tpu_custom_call.1} parent=91 // pred_fallthru
          _
        %s809 = scalar_lea.vmem %s661, %s670
        %v810 = vld [vmem:[%s809] sm:$0xff]
        %v811 = vld [vmem:[%s668] sm:$0x1]
        %v813 = vlaneseq
        %v814 = vshrl.u32 %v813, 7
        %v815 = vsub.s32 0, %v814
        %v816 = vrot.slane %v811, %v815
        %v818 = vpack.c.bf16 %v810, %v810
        %v819 = vld [vmem:[%s3] sm:$0xf]
        %v820 = vld [vmem:[%s3 + $0x4] sm:$0xf]
        %v821 = vld [vmem:[%s3 + $0x8] sm:$0xf]
        %v822 = vld [vmem:[%s3 + $0xc] sm:$0xf]
        %v823 = vld [vmem:[#allocation4] sm:$0x1]
        %v825 = vlaneseq
        %v826 = vshrl.u32 %v825, 7
        %v827 = vsub.s32 0, %v826
        %v828 = vrot.slane %v823, %v827
        %v834 = vunpack.c.l.b16 %v819
        %v835 = vunpack.c.l.b16 %v820
        %v836 = vunpack.c.l.b16 %v821
        %v837 = vunpack.c.l.b16 %v822
        %v838 = vpack.c.b16 %v835, %v834
        %v839 = vpack.c.b16 %v837, %v836
        %vm842 = vcmask 261120
        %v844 = vsel %vm842, %v818, 0
        %846 = vmatprep.subr.bf16.mxu0 0
        %847 = vmatpush1.bf16.msra.mxu0 %v838
        %848 = vmatprep.subr.bf16.mxu0 0
        %849 = vmatpush1.bf16.msra.mxu0 %v839
        %850 = vmatprep.subr.bf16.mxu0 0
        %851 = vmatpush1.bf16.msra.mxu0 0
        %852 = vmatprep.subr.bf16.mxu0 0
        %853 = vmatpush1.bf16.msra.mxu0 0
        %854 = vmatprep.subr.bf16.mxu0 0
        %855 = vmatpush1.bf16.msra.mxu0 0
        %856 = vmatprep.subr.bf16.mxu0 0
        %857 = vmatpush1.bf16.msra.mxu0 0
        %858 = vmatprep.subr.bf16.mxu0 0
        %859 = vmatpush1.bf16.msra.mxu0 0
        %860 = vmatprep.subr.bf16.mxu0 0
        %861 = vmatpush1.bf16.msra.mxu0 0
        %862 = vmatprep.subr.bf16.mxu0 0
        %863 = vmatpush1.bf16.msra.mxu0 0
        %864 = vmatprep.subr.bf16.mxu0 0
        %865 = vmatpush1.bf16.msra.mxu0 0
        %866 = vmatprep.subr.bf16.mxu0 0
        %867 = vmatpush1.bf16.msra.mxu0 0
        %868 = vmatprep.subr.bf16.mxu0 0
        %869 = vmatpush1.bf16.msra.mxu0 0
        %870 = vmatprep.subr.bf16.mxu0 0
        %871 = vmatpush1.bf16.msra.mxu0 0
        %872 = vmatprep.subr.bf16.mxu0 0
        %873 = vmatpush1.bf16.msra.mxu0 0
        %874 = vmatprep.subr.bf16.mxu0 0
        %875 = vmatpush1.bf16.msra.mxu0 0
        %876 = vmatprep.subr.bf16.mxu0 0
        %877 = vmatpush1.bf16.msra.mxu0 0
        %878 = vmatprep.mubr.bf16.mxu0 0
        %879 = vmatmul.mubr.bf16.gmra.mrb[0].mxu0 %v844
        %v880 = vpop.f32.mrb[0].mxu0
        %v881 = vadd.f32 %v828, %v880
        %v882 = vpop.f32.mrb[0].mxu0
        %v883 = vpop.f32.mrb[0].mxu0
        %v884 = vpop.f32.mrb[0].mxu0
        %885 = vdwg.mxu0
        %v886 = vpack.c.bf16 %v881, %v881
        %v887 = vld [vmem:[#allocation2] sm:$0xf]
        %vm888 = vcmask 64512
        %v890 = vsel %vm888, %v886, 0
        %v893 = vsel %vm888, %v887, 0
        %895 = vmatprep.subr.bf16.mxu0 0
        %896 = vmatpush1.bf16.xpose.msra.mxu0 %v893
        %897 = vmatprep.subr.bf16.mxu0 0
        %898 = vmatpush1.bf16.xpose.msra.mxu0 0
        %899 = vmatprep.subr.bf16.mxu0 0
        %900 = vmatpush1.bf16.xpose.msra.mxu0 0
        %901 = vmatprep.subr.bf16.mxu0 0
        %902 = vmatpush1.bf16.xpose.msra.mxu0 0
        %903 = vmatprep.subr.bf16.mxu0 0
        %904 = vmatpush1.bf16.xpose.msra.mxu0 0
        %905 = vmatprep.subr.bf16.mxu0 0
        %906 = vmatpush1.bf16.xpose.msra.mxu0 0
        %907 = vmatprep.subr.bf16.mxu0 0
        %908 = vmatpush1.bf16.xpose.msra.mxu0 0
        %909 = vmatprep.subr.bf16.mxu0 0
        %910 = vmatpush1.bf16.xpose.msra.mxu0 0
        %911 = vmatprep.subr.bf16.mxu0 0
        %912 = vmatpush1.bf16.xpose.msra.mxu0 0
        %913 = vmatprep.subr.bf16.mxu0 0
        %914 = vmatpush1.bf16.xpose.msra.mxu0 0
        %915 = vmatprep.subr.bf16.mxu0 0
        %916 = vmatpush1.bf16.xpose.msra.mxu0 0
        %917 = vmatprep.subr.bf16.mxu0 0
        %918 = vmatpush1.bf16.xpose.msra.mxu0 0
        %919 = vmatprep.subr.bf16.mxu0 0
        %920 = vmatpush1.bf16.xpose.msra.mxu0 0
        %921 = vmatprep.subr.bf16.mxu0 0
        %922 = vmatpush1.bf16.xpose.msra.mxu0 0
        %923 = vmatprep.subr.bf16.mxu0 0
        %924 = vmatpush1.bf16.xpose.msra.mxu0 0
        %925 = vmatprep.subr.bf16.mxu0 0
        %926 = vmatpush1.bf16.xpose.msra.mxu0 0
        %927 = vmatprep.mubr.bf16.mxu0 0
        %928 = vmatmul.mubr.bf16.gmra.mrb[0].mxu0 %v890
        %v929 = vpop.f32.mrb[0].mxu0
        %v930 = vadd.f32 %v816, %v929
        %v931 = vpop.f32.mrb[0].mxu0
        %v932 = vpop.f32.mrb[0].mxu0
        %v933 = vpop.f32.mrb[0].mxu0
        %934 = vdwg.mxu0
        %v935 = vsel %vm888, %v930, -inf
        %936 = vmax.xlane.f32.xlu0 %v935
        %v937 = vpop.xlane.xlu0 %936
        %v938 = vsub.f32 %v930, %v937
        %v939 = vmul.f32 %v938, 1.442695
        %v940 = vpow.pop %v939
        %v941 = vsel %vm888, %v940, 0.0
        %942 = vadd.xlane.f32.xlu0 %v941
        %v943 = vpop.xlane.xlu0 %942
        %v944 = vrcp.pop %v943
        %v945 = vmul.f32 %v940, %v944
        %v946 = vpack.c.bf16 %v945, %v945
        %v948 = vunpack.c.l.b16 %v887
        %v949 = vpack.c.b16 %v948, %v948
        %950 = vrot.lane.b32.xlu0 %v949, 96
        %v951 = vpop.permute.xlu0 %950
        %v953 = vsel %vm888, %v946, 0
        %vm955 = vcmask 1043456
        %v957 = vsel %vm955, %v951, 0
        %959 = vmatprep.subr.bf16.mxu0 0
        %960 = vmatpush1.bf16.msra.mxu0 %v957
        %961 = vmatprep.subr.bf16.mxu0 0
        %962 = vmatpush1.bf16.msra.mxu0 0
        %963 = vmatprep.subr.bf16.mxu0 0
        %964 = vmatpush1.bf16.msra.mxu0 0
        %965 = vmatprep.subr.bf16.mxu0 0
        %966 = vmatpush1.bf16.msra.mxu0 0
        %967 = vmatprep.subr.bf16.mxu0 0
        %968 = vmatpush1.bf16.msra.mxu0 0
        %969 = vmatprep.subr.bf16.mxu0 0
        %970 = vmatpush1.bf16.msra.mxu0 0
        %971 = vmatprep.subr.bf16.mxu0 0
        %972 = vmatpush1.bf16.msra.mxu0 0
        %973 = vmatprep.subr.bf16.mxu0 0
        %974 = vmatpush1.bf16.msra.mxu0 0
        %975 = vmatprep.subr.bf16.mxu0 0
        %976 = vmatpush1.bf16.msra.mxu0 0
        %977 = vmatprep.subr.bf16.mxu0 0
        %978 = vmatpush1.bf16.msra.mxu0 0
        %979 = vmatprep.subr.bf16.mxu0 0
        %980 = vmatpush1.bf16.msra.mxu0 0
        %981 = vmatprep.subr.bf16.mxu0 0
        %982 = vmatpush1.bf16.msra.mxu0 0
        %983 = vmatprep.subr.bf16.mxu0 0
        %984 = vmatpush1.bf16.msra.mxu0 0
        %985 = vmatprep.subr.bf16.mxu0 0
        %986 = vmatpush1.bf16.msra.mxu0 0
        %987 = vmatprep.subr.bf16.mxu0 0
        %988 = vmatpush1.bf16.msra.mxu0 0
        %989 = vmatprep.subr.bf16.mxu0 0
        %990 = vmatpush1.bf16.msra.mxu0 0
        %991 = vmatprep.mubr.bf16.mxu0 0
        %992 = vmatmul.mubr.bf16.gmra.mrb[0].mxu0 %v953
        %v993 = vpop.f32.mrb[0].mxu0
        %v994 = vadd.f32 0.0, %v993
        %v995 = vpop.f32.mrb[0].mxu0
        %v996 = vpop.f32.mrb[0].mxu0
        %v997 = vpop.f32.mrb[0].mxu0
        %998 = vdwg.mxu0
        %v999 = vpack.c.bf16 %v994, %v994
        %vm1000 = vcmask 60416
        %1001 = vst.msk [vmem:[#allocation3] sm:$0xf] %vm1000, %v999
        %v1002 = vld [vmem:[#allocation2] sm:$0xf]
        %1004 = vrot.lane.b32.xlu0 %v886, 120
        %v1005 = vpop.permute.xlu0 %1004
        %v1007 = vunpack.c.l.b16 %v1002
        %v1008 = vpack.c.b16 %v1007, %v1007
        %1009 = vrot.lane.b32.xlu0 %v1008, 120
        %v1010 = vpop.permute.xlu0 %1009
        %v1012 = vsel %vm888, %v1005, 0
        %v1015 = vsel %vm888, %v1010, 0
        %1017 = vmatprep.subr.bf16.mxu0 0
        %1018 = vmatpush1.bf16.xpose.msra.mxu0 %v1015
        %1019 = vmatprep.subr.bf16.mxu0 0
        %1020 = vmatpush1.bf16.xpose.msra.mxu0 0
        %1021 = vmatprep.subr.bf16.mxu0 0
        %1022 = vmatpush1.bf16.xpose.msra.mxu0 0
        %1023 = vmatprep.subr.bf16.mxu0 0
        %1024 = vmatpush1.bf16.xpose.msra.mxu0 0
        %1025 = vmatprep.subr.bf16.mxu0 0
        %1026 = vmatpush1.bf16.xpose.msra.mxu0 0
        %1027 = vmatprep.subr.bf16.mxu0 0
        %1028 = vmatpush1.bf16.xpose.msra.mxu0 0
        %1029 = vmatprep.subr.bf16.mxu0 0
        %1030 = vmatpush1.bf16.xpose.msra.mxu0 0
        %1031 = vmatprep.subr.bf16.mxu0 0
        %1032 = vmatpush1.bf16.xpose.msra.mxu0 0
        %1033 = vmatprep.subr.bf16.mxu0 0
        %1034 = vmatpush1.bf16.xpose.msra.mxu0 0
        %1035 = vmatprep.subr.bf16.mxu0 0
        %1036 = vmatpush1.bf16.xpose.msra.mxu0 0
        %1037 = vmatprep.subr.bf16.mxu0 0
        %1038 = vmatpush1.bf16.xpose.msra.mxu0 0
        %1039 = vmatprep.subr.bf16.mxu0 0
        %1040 = vmatpush1.bf16.xpose.msra.mxu0 0
        %1041 = vmatprep.subr.bf16.mxu0 0
        %1042 = vmatpush1.bf16.xpose.msra.mxu0 0
        %1043 = vmatprep.subr.bf16.mxu0 0
        %1044 = vmatpush1.bf16.xpose.msra.mxu0 0
        %1045 = vmatprep.subr.bf16.mxu0 0
        %1046 = vmatpush1.bf16.xpose.msra.mxu0 0
        %1047 = vmatprep.subr.bf16.mxu0 0
        %1048 = vmatpush1.bf16.xpose.msra.mxu0 0
        %1049 = vmatprep.mubr.bf16.mxu0 0
        %1050 = vmatmul.mubr.bf16.gmra.mrb[0].mxu0 %v1012
        %v1051 = vpop.f32.mrb[0].mxu0
        %v1052 = vadd.f32 %v816, %v1051
        %v1053 = vpop.f32.mrb[0].mxu0
        %v1054 = vpop.f32.mrb[0].mxu0
        %v1055 = vpop.f32.mrb[0].mxu0
        %1056 = vdwg.mxu0
        %v1057 = vsel %vm888, %v1052, -inf
        %1058 = vmax.xlane.f32.xlu0 %v1057
        %v1059 = vpop.xlane.xlu0 %1058
        %v1060 = vsub.f32 %v1052, %v1059
        %v1061 = vmul.f32 %v1060, 1.442695
        %v1062 = vpow.pop %v1061
        %v1063 = vsel %vm888, %v1062, 0.0
        %1064 = vadd.xlane.f32.xlu0 %v1063
        %v1065 = vpop.xlane.xlu0 %1064
        %v1066 = vrcp.pop %v1065
        %v1067 = vmul.f32 %v1062, %v1066
        %v1068 = vpack.c.bf16 %v1067, %v1067
        %1069 = vrot.lane.b32.xlu0 %v1008, 88
        %v1070 = vpop.permute.xlu0 %1069
        %v1072 = vsel %vm888, %v1068, 0
        %v1075 = vsel %vm955, %v1070, 0
        %1077 = vmatprep.subr.bf16.mxu0 0
        %1078 = vmatpush1.bf16.msra.mxu0 %v1075
        %1079 = vmatprep.subr.bf16.mxu0 0
        %1080 = vmatpush1.bf16.msra.mxu0 0
        %1081 = vmatprep.subr.bf16.mxu0 0
        %1082 = vmatpush1.bf16.msra.mxu0 0
        %1083 = vmatprep.subr.bf16.mxu0 0
        %1084 = vmatpush1.bf16.msra.mxu0 0
        %1085 = vmatprep.subr.bf16.mxu0 0
        %1086 = vmatpush1.bf16.msra.mxu0 0
        %1087 = vmatprep.subr.bf16.mxu0 0
        %1088 = vmatpush1.bf16.msra.mxu0 0
        %1089 = vmatprep.subr.bf16.mxu0 0
        %1090 = vmatpush1.bf16.msra.mxu0 0
        %1091 = vmatprep.subr.bf16.mxu0 0
        %1092 = vmatpush1.bf16.msra.mxu0 0
        %1093 = vmatprep.subr.bf16.mxu0 0
        %1094 = vmatpush1.bf16.msra.mxu0 0
        %1095 = vmatprep.subr.bf16.mxu0 0
        %1096 = vmatpush1.bf16.msra.mxu0 0
        %1097 = vmatprep.subr.bf16.mxu0 0
        %1098 = vmatpush1.bf16.msra.mxu0 0
        %1099 = vmatprep.subr.bf16.mxu0 0
        %1100 = vmatpush1.bf16.msra.mxu0 0
        %1101 = vmatprep.subr.bf16.mxu0 0
        %1102 = vmatpush1.bf16.msra.mxu0 0
        %1103 = vmatprep.subr.bf16.mxu0 0
        %1104 = vmatpush1.bf16.msra.mxu0 0
        %1105 = vmatprep.subr.bf16.mxu0 0
        %1106 = vmatpush1.bf16.msra.mxu0 0
        %1107 = vmatprep.subr.bf16.mxu0 0
        %1108 = vmatpush1.bf16.msra.mxu0 0
        %1109 = vmatprep.mubr.bf16.mxu0 0
        %1110 = vmatmul.mubr.bf16.gmra.mrb[0].mxu0 %v1072
        %v1111 = vpop.f32.mrb[0].mxu0
        %v1112 = vadd.f32 0.0, %v1111
        %v1113 = vpop.f32.mrb[0].mxu0
        %v1114 = vpop.f32.mrb[0].mxu0
        %v1115 = vpop.f32.mrb[0].mxu0
        %1116 = vdwg.mxu0
        %v1117 = vpack.c.bf16 %v1112, %v1112
        %v1119 = vunpack.c.l.b16 %v1117
        %v1120 = vpack.c.b16 %v1119, %v1119
        %1121 = vrot.lane.b32.xlu0 %v1120, 8
        %v1122 = vpop.permute.xlu0 %1121
        %vm1124 = vcmask 126016
        %1125 = vst.msk [vmem:[#allocation3] sm:$0xf] %vm1124, %v1122
        %v1126 = vld [vmem:[#allocation2] sm:$0xf]
        %1127 = vrot.lane.b32.xlu0 %v886, 112
        %v1128 = vpop.permute.xlu0 %1127
        %v1130 = vunpack.c.l.b16 %v1126
        %v1131 = vpack.c.b16 %v1130, %v1130
        %1132 = vrot.lane.b32.xlu0 %v1131, 112
        %v1133 = vpop.permute.xlu0 %1132
        %v1135 = vsel %vm888, %v1128, 0
        %v1138 = vsel %vm888, %v1133, 0
        %1140 = vmatprep.subr.bf16.mxu0 0
        %1141 = vmatpush1.bf16.xpose.msra.mxu0 %v1138
        %1142 = vmatprep.subr.bf16.mxu0 0
        %1143 = vmatpush1.bf16.xpose.msra.mxu0 0
        %1144 = vmatprep.subr.bf16.mxu0 0
        %1145 = vmatpush1.bf16.xpose.msra.mxu0 0
        %1146 = vmatprep.subr.bf16.mxu0 0
        %1147 = vmatpush1.bf16.xpose.msra.mxu0 0
        %1148 = vmatprep.subr.bf16.mxu0 0
        %1149 = vmatpush1.bf16.xpose.msra.mxu0 0
        %1150 = vmatprep.subr.bf16.mxu0 0
        %1151 = vmatpush1.bf16.xpose.msra.mxu0 0
        %1152 = vmatprep.subr.bf16.mxu0 0
        %1153 = vmatpush1.bf16.xpose.msra.mxu0 0
        %1154 = vmatprep.subr.bf16.mxu0 0
        %1155 = vmatpush1.bf16.xpose.msra.mxu0 0
        %1156 = vmatprep.subr.bf16.mxu0 0
        %1157 = vmatpush1.bf16.xpose.msra.mxu0 0
        %1158 = vmatprep.subr.bf16.mxu0 0
        %1159 = vmatpush1.bf16.xpose.msra.mxu0 0
        %1160 = vmatprep.subr.bf16.mxu0 0
        %1161 = vmatpush1.bf16.xpose.msra.mxu0 0
        %1162 = vmatprep.subr.bf16.mxu0 0
        %1163 = vmatpush1.bf16.xpose.msra.mxu0 0
        %1164 = vmatprep.subr.bf16.mxu0 0
        %1165 = vmatpush1.bf16.xpose.msra.mxu0 0
        %1166 = vmatprep.subr.bf16.mxu0 0
        %1167 = vmatpush1.bf16.xpose.msra.mxu0 0
        %1168 = vmatprep.subr.bf16.mxu0 0
        %1169 = vmatpush1.bf16.xpose.msra.mxu0 0
        %1170 = vmatprep.subr.bf16.mxu0 0
        %1171 = vmatpush1.bf16.xpose.msra.mxu0 0
        %1172 = vmatprep.mubr.bf16.mxu0 0
        %1173 = vmatmul.mubr.bf16.gmra.mrb[0].mxu0 %v1135
        %v1174 = vpop.f32.mrb[0].mxu0
        %v1175 = vadd.f32 %v816, %v1174
        %v1176 = vpop.f32.mrb[0].mxu0
        %v1177 = vpop.f32.mrb[0].mxu0
        %v1178 = vpop.f32.mrb[0].mxu0
        %1179 = vdwg.mxu0
        %v1180 = vsel %vm888, %v1175, -inf
        %1181 = vmax.xlane.f32.xlu0 %v1180
        %v1182 = vpop.xlane.xlu0 %1181
        %v1183 = vsub.f32 %v1175, %v1182
        %v1184 = vmul.f32 %v1183, 1.442695
        %v1185 = vpow.pop %v1184
        %v1186 = vsel %vm888, %v1185, 0.0
        %1187 = vadd.xlane.f32.xlu0 %v1186
        %v1188 = vpop.xlane.xlu0 %1187
        %v1189 = vrcp.pop %v1188
        %v1190 = vmul.f32 %v1185, %v1189
        %v1191 = vpack.c.bf16 %v1190, %v1190
        %1192 = vrot.lane.b32.xlu0 %v1131, 80
        %v1193 = vpop.permute.xlu0 %1192
        %v1195 = vsel %vm888, %v1191, 0
        %v1198 = vsel %vm955, %v1193, 0
        %1200 = vmatprep.subr.bf16.mxu0 0
        %1201 = vmatpush1.bf16.msra.mxu0 %v1198
        %1202 = vmatprep.subr.bf16.mxu0 0
        %1203 = vmatpush1.bf16.msra.mxu0 0
        %1204 = vmatprep.subr.bf16.mxu0 0
        %1205 = vmatpush1.bf16.msra.mxu0 0
        %1206 = vmatprep.subr.bf16.mxu0 0
        %1207 = vmatpush1.bf16.msra.mxu0 0
        %1208 = vmatprep.subr.bf16.mxu0 0
        %1209 = vmatpush1.bf16.msra.mxu0 0
        %1210 = vmatprep.subr.bf16.mxu0 0
        %1211 = vmatpush1.bf16.msra.mxu0 0
        %1212 = vmatprep.subr.bf16.mxu0 0
        %1213 = vmatpush1.bf16.msra.mxu0 0
        %1214 = vmatprep.subr.bf16.mxu0 0
        %1215 = vmatpush1.bf16.msra.mxu0 0
        %1216 = vmatprep.subr.bf16.mxu0 0
        %1217 = vmatpush1.bf16.msra.mxu0 0
        %1218 = vmatprep.subr.bf16.mxu0 0
        %1219 = vmatpush1.bf16.msra.mxu0 0
        %1220 = vmatprep.subr.bf16.mxu0 0
        %1221 = vmatpush1.bf16.msra.mxu0 0
        %1222 = vmatprep.subr.bf16.mxu0 0
        %1223 = vmatpush1.bf16.msra.mxu0 0
        %1224 = vmatprep.subr.bf16.mxu0 0
        %1225 = vmatpush1.bf16.msra.mxu0 0
        %1226 = vmatprep.subr.bf16.mxu0 0
        %1227 = vmatpush1.bf16.msra.mxu0 0
        %1228 = vmatprep.subr.bf16.mxu0 0
        %1229 = vmatpush1.bf16.msra.mxu0 0
        %1230 = vmatprep.subr.bf16.mxu0 0
        %1231 = vmatpush1.bf16.msra.mxu0 0
        %1232 = vmatprep.mubr.bf16.mxu0 0
        %1233 = vmatmul.mubr.bf16.gmra.mrb[0].mxu0 %v1195
        %v1234 = vpop.f32.mrb[0].mxu0
        %v1235 = vadd.f32 0.0, %v1234
        %v1236 = vpop.f32.mrb[0].mxu0
        %v1237 = vpop.f32.mrb[0].mxu0
        %v1238 = vpop.f32.mrb[0].mxu0
        %1239 = vdwg.mxu0
        %v1240 = vpack.c.bf16 %v1235, %v1235
        %v1242 = vunpack.c.l.b16 %v1240
        %v1243 = vpack.c.b16 %v1242, %v1242
        %1244 = vrot.lane.b32.xlu0 %v1243, 16
        %v1245 = vpop.permute.xlu0 %1244
        %vm1247 = vcmask 191616
        %1248 = vst.msk [vmem:[#allocation3] sm:$0xf] %vm1247, %v1245
        %v1249 = vld [vmem:[#allocation2] sm:$0xf]
        %1250 = vrot.lane.b32.xlu0 %v886, 104
        %v1251 = vpop.permute.xlu0 %1250
        %v1253 = vunpack.c.l.b16 %v1249
        %v1254 = vpack.c.b16 %v1253, %v1253
        %1255 = vrot.lane.b32.xlu0 %v1254, 104
        %v1256 = vpop.permute.xlu0 %1255
        %v1258 = vsel %vm888, %v1251, 0
        %v1261 = vsel %vm888, %v1256, 0
        %1263 = vmatprep.subr.bf16.mxu0 0
        %1264 = vmatpush1.bf16.xpose.msra.mxu0 %v1261
        %1265 = vmatprep.subr.bf16.mxu0 0
        %1266 = vmatpush1.bf16.xpose.msra.mxu0 0
        %1267 = vmatprep.subr.bf16.mxu0 0
        %1268 = vmatpush1.bf16.xpose.msra.mxu0 0
        %1269 = vmatprep.subr.bf16.mxu0 0
        %1270 = vmatpush1.bf16.xpose.msra.mxu0 0
        %1271 = vmatprep.subr.bf16.mxu0 0
        %1272 = vmatpush1.bf16.xpose.msra.mxu0 0
        %1273 = vmatprep.subr.bf16.mxu0 0
        %1274 = vmatpush1.bf16.xpose.msra.mxu0 0
        %1275 = vmatprep.subr.bf16.mxu0 0
        %1276 = vmatpush1.bf16.xpose.msra.mxu0 0
        %1277 = vmatprep.subr.bf16.mxu0 0
        %1278 = vmatpush1.bf16.xpose.msra.mxu0 0
        %1279 = vmatprep.subr.bf16.mxu0 0
        %1280 = vmatpush1.bf16.xpose.msra.mxu0 0
        %1281 = vmatprep.subr.bf16.mxu0 0
        %1282 = vmatpush1.bf16.xpose.msra.mxu0 0
        %1283 = vmatprep.subr.bf16.mxu0 0
        %1284 = vmatpush1.bf16.xpose.msra.mxu0 0
        %1285 = vmatprep.subr.bf16.mxu0 0
        %1286 = vmatpush1.bf16.xpose.msra.mxu0 0
        %1287 = vmatprep.subr.bf16.mxu0 0
        %1288 = vmatpush1.bf16.xpose.msra.mxu0 0
        %1289 = vmatprep.subr.bf16.mxu0 0
        %1290 = vmatpush1.bf16.xpose.msra.mxu0 0
        %1291 = vmatprep.subr.bf16.mxu0 0
        %1292 = vmatpush1.bf16.xpose.msra.mxu0 0
        %1293 = vmatprep.subr.bf16.mxu0 0
        %1294 = vmatpush1.bf16.xpose.msra.mxu0 0
        %1295 = vmatprep.mubr.bf16.mxu0 0
        %1296 = vmatmul.mubr.bf16.gmra.mrb[0].mxu0 %v1258
        %v1297 = vpop.f32.mrb[0].mxu0
        %v1298 = vadd.f32 %v816, %v1297
        %v1299 = vpop.f32.mrb[0].mxu0
        %v1300 = vpop.f32.mrb[0].mxu0
        %v1301 = vpop.f32.mrb[0].mxu0
        %1302 = vdwg.mxu0
        %v1303 = vsel %vm888, %v1298, -inf
        %1304 = vmax.xlane.f32.xlu0 %v1303
        %v1305 = vpop.xlane.xlu0 %1304
        %v1306 = vsub.f32 %v1298, %v1305
        %v1307 = vmul.f32 %v1306, 1.442695
        %v1308 = vpow.pop %v1307
        %v1309 = vsel %vm888, %v1308, 0.0
        %1310 = vadd.xlane.f32.xlu0 %v1309
        %v1311 = vpop.xlane.xlu0 %1310
        %v1312 = vrcp.pop %v1311
        %v1313 = vmul.f32 %v1308, %v1312
        %v1314 = vpack.c.bf16 %v1313, %v1313
        %1315 = vrot.lane.b32.xlu0 %v1254, 72
        %v1316 = vpop.permute.xlu0 %1315
        %v1318 = vsel %vm888, %v1314, 0
        %v1321 = vsel %vm955, %v1316, 0
        %1323 = vmatprep.subr.bf16.mxu0 0
        %1324 = vmatpush1.bf16.msra.mxu0 %v1321
        %1325 = vmatprep.subr.bf16.mxu0 0
        %1326 = vmatpush1.bf16.msra.mxu0 0
        %1327 = vmatprep.subr.bf16.mxu0 0
        %1328 = vmatpush1.bf16.msra.mxu0 0
        %1329 = vmatprep.subr.bf16.mxu0 0
        %1330 = vmatpush1.bf16.msra.mxu0 0
        %1331 = vmatprep.subr.bf16.mxu0 0
        %1332 = vmatpush1.bf16.msra.mxu0 0
        %1333 = vmatprep.subr.bf16.mxu0 0
        %1334 = vmatpush1.bf16.msra.mxu0 0
        %1335 = vmatprep.subr.bf16.mxu0 0
        %1336 = vmatpush1.bf16.msra.mxu0 0
        %1337 = vmatprep.subr.bf16.mxu0 0
        %1338 = vmatpush1.bf16.msra.mxu0 0
        %1339 = vmatprep.subr.bf16.mxu0 0
        %1340 = vmatpush1.bf16.msra.mxu0 0
        %1341 = vmatprep.subr.bf16.mxu0 0
        %1342 = vmatpush1.bf16.msra.mxu0 0
        %1343 = vmatprep.subr.bf16.mxu0 0
        %1344 = vmatpush1.bf16.msra.mxu0 0
        %1345 = vmatprep.subr.bf16.mxu0 0
        %1346 = vmatpush1.bf16.msra.mxu0 0
        %1347 = vmatprep.subr.bf16.mxu0 0
        %1348 = vmatpush1.bf16.msra.mxu0 0
        %1349 = vmatprep.subr.bf16.mxu0 0
        %1350 = vmatpush1.bf16.msra.mxu0 0
        %1351 = vmatprep.subr.bf16.mxu0 0
        %1352 = vmatpush1.bf16.msra.mxu0 0
        %1353 = vmatprep.subr.bf16.mxu0 0
        %1354 = vmatpush1.bf16.msra.mxu0 0
        %1355 = vmatprep.mubr.bf16.mxu0 0
        %1356 = vmatmul.mubr.bf16.gmra.mrb[0].mxu0 %v1318
        %v1357 = vpop.f32.mrb[0].mxu0
        %v1358 = vadd.f32 0.0, %v1357
        %v1359 = vpop.f32.mrb[0].mxu0
        %v1360 = vpop.f32.mrb[0].mxu0
        %v1361 = vpop.f32.mrb[0].mxu0
        %1362 = vdwg.mxu0
        %v1363 = vpack.c.bf16 %v1358, %v1358
        %v1365 = vunpack.c.l.b16 %v1363
        %v1366 = vpack.c.b16 %v1365, %v1365
        %1367 = vrot.lane.b32.xlu0 %v1366, 24
        %v1368 = vpop.permute.xlu0 %1367
        %vm1370 = vcmask 257216
        %1371 = vst.msk [vmem:[#allocation3] sm:$0xf] %vm1370, %v1368
        %v1372 = vld [vmem:[#allocation3] sm:$0xf]
        %v1373 = vld [vmem:[#allocation9] sm:$0xf]
        %v1374 = vld [vmem:[#allocation9 + $0x4] sm:$0xf]
        %v1375 = vld [vmem:[#allocation9 + $0x8] sm:$0xf]
        %v1376 = vld [vmem:[#allocation9 + $0xc] sm:$0xf]
        %v1377 = vld [vmem:[#allocation10] sm:$0x1]
        %v1379 = vlaneseq
        %v1380 = vshrl.u32 %v1379, 7
        %v1381 = vsub.s32 0, %v1380
        %v1382 = vrot.slane %v1377, %v1381
        %v1388 = vunpack.c.l.b16 %v1373
        %v1389 = vunpack.c.l.b16 %v1374
        %v1390 = vunpack.c.l.b16 %v1375
        %v1391 = vunpack.c.l.b16 %v1376
        %v1392 = vpack.c.b16 %v1389, %v1388
        %v1393 = vpack.c.b16 %v1391, %v1390
        %v1397 = vsel %vm842, %v1372, 0
        %1399 = vmatprep.subr.bf16.mxu0 0
        %1400 = vmatpush1.bf16.msra.mxu0 %v1392
        %1401 = vmatprep.subr.bf16.mxu0 0
        %1402 = vmatpush1.bf16.msra.mxu0 %v1393
        %1403 = vmatprep.subr.bf16.mxu0 0
        %1404 = vmatpush1.bf16.msra.mxu0 0
        %1405 = vmatprep.subr.bf16.mxu0 0
        %1406 = vmatpush1.bf16.msra.mxu0 0
        %1407 = vmatprep.subr.bf16.mxu0 0
        %1408 = vmatpush1.bf16.msra.mxu0 0
        %1409 = vmatprep.subr.bf16.mxu0 0
        %1410 = vmatpush1.bf16.msra.mxu0 0
        %1411 = vmatprep.subr.bf16.mxu0 0
        %1412 = vmatpush1.bf16.msra.mxu0 0
        %1413 = vmatprep.subr.bf16.mxu0 0
        %1414 = vmatpush1.bf16.msra.mxu0 0
        %1415 = vmatprep.subr.bf16.mxu0 0
        %1416 = vmatpush1.bf16.msra.mxu0 0
        %1417 = vmatprep.subr.bf16.mxu0 0
        %1418 = vmatpush1.bf16.msra.mxu0 0
        %1419 = vmatprep.subr.bf16.mxu0 0
        %1420 = vmatpush1.bf16.msra.mxu0 0
        %1421 = vmatprep.subr.bf16.mxu0 0
        %1422 = vmatpush1.bf16.msra.mxu0 0
        %1423 = vmatprep.subr.bf16.mxu0 0
        %1424 = vmatpush1.bf16.msra.mxu0 0
        %1425 = vmatprep.subr.bf16.mxu0 0
        %1426 = vmatpush1.bf16.msra.mxu0 0
        %1427 = vmatprep.subr.bf16.mxu0 0
        %1428 = vmatpush1.bf16.msra.mxu0 0
        %1429 = vmatprep.subr.bf16.mxu0 0
        %1430 = vmatpush1.bf16.msra.mxu0 0
        %1431 = vmatprep.mubr.bf16.mxu0 0
        %1432 = vmatmul.mubr.bf16.gmra.mrb[0].mxu0 %v1397
        %v1433 = vpop.f32.mrb[0].mxu0
        %v1434 = vadd.f32 %v1382, %v1433
        %v1435 = vpop.f32.mrb[0].mxu0
        %v1436 = vpop.f32.mrb[0].mxu0
        %v1437 = vpop.f32.mrb[0].mxu0
        %1438 = vdwg.mxu0
        %v1439 = vadd.f32 %v1434, %v810
        %v1440 = vld [vmem:[%s10] sm:$0x1]
        %v1441 = vld [vmem:[%s11] sm:$0x1]
        %v1442 = vsel %vm842, %v1439, 0.0
        %1443 = vadd.xlane.f32.xlu0 %v1442
        %v1444 = vpop.xlane.xlu0 %1443
        %v1445 = vmul.f32 %v1439, %v1439
        %v1446 = vsel %vm842, %v1445, 0.0
        %1447 = vadd.xlane.f32.xlu0 %v1446
        %v1448 = vpop.xlane.xlu0 %1447
        %v1449 = vmul.f32 %v1444, 0.03125
        %v1450 = vmul.f32 %v1448, 0.03125
        %v1451 = vmul.f32 %v1449, %v1449
        %v1452 = vsub.f32 %v1450, %v1451
        %v1453 = vmax.f32 %v1452, 0.0
        %v1454 = vsub.f32 %v1439, %v1449
        %v1455 = vadd.f32 %v1453, 1e-12
        %v1456 = vrsqrt.pop %v1455
        %v1457 = vmul.f32 %v1454, %v1456
        %v1459 = vlaneseq
        %v1460 = vshrl.u32 %v1459, 7
        %v1461 = vsub.s32 0, %v1460
        %v1462 = vrot.slane %v1440, %v1461
        %v1464 = vmul.f32 %v1457, %v1462
        %v1466 = vlaneseq
        %v1467 = vshrl.u32 %v1466, 7
        %v1468 = vsub.s32 0, %v1467
        %v1469 = vrot.slane %v1441, %v1468
        %v1471 = vadd.f32 %v1464, %v1469
        %v1472 = vpack.c.bf16 %v1471, %v1471
        %v1473 = vld [vmem:[%s12] sm:$0xf]
        %v1474 = vld [vmem:[%s12 + $0x4] sm:$0xf]
        %v1475 = vld [vmem:[%s12 + $0x8] sm:$0xf]
        %v1476 = vld [vmem:[%s12 + $0xc] sm:$0xf]
        %v1477 = vld [vmem:[%s13] sm:$0x1]
        %v1479 = vlaneseq
        %v1480 = vshrl.u32 %v1479, 7
        %v1481 = vsub.s32 0, %v1480
        %v1482 = vrot.slane %v1477, %v1481
        %v1488 = vunpack.c.l.b16 %v1473
        %v1489 = vunpack.c.l.b16 %v1474
        %v1490 = vunpack.c.l.b16 %v1475
        %v1491 = vunpack.c.l.b16 %v1476
        %v1492 = vpack.c.b16 %v1489, %v1488
        %v1493 = vpack.c.b16 %v1491, %v1490
        %v1497 = vsel %vm842, %v1472, 0
        %1499 = vmatprep.subr.bf16.mxu0 0
        %1500 = vmatpush1.bf16.msra.mxu0 %v1492
        %1501 = vmatprep.subr.bf16.mxu0 0
        %1502 = vmatpush1.bf16.msra.mxu0 %v1493
        %1503 = vmatprep.subr.bf16.mxu0 0
        %1504 = vmatpush1.bf16.msra.mxu0 0
        %1505 = vmatprep.subr.bf16.mxu0 0
        %1506 = vmatpush1.bf16.msra.mxu0 0
        %1507 = vmatprep.subr.bf16.mxu0 0
        %1508 = vmatpush1.bf16.msra.mxu0 0
        %1509 = vmatprep.subr.bf16.mxu0 0
        %1510 = vmatpush1.bf16.msra.mxu0 0
        %1511 = vmatprep.subr.bf16.mxu0 0
        %1512 = vmatpush1.bf16.msra.mxu0 0
        %1513 = vmatprep.subr.bf16.mxu0 0
        %1514 = vmatpush1.bf16.msra.mxu0 0
        %1515 = vmatprep.subr.bf16.mxu0 0
        %1516 = vmatpush1.bf16.msra.mxu0 0
        %1517 = vmatprep.subr.bf16.mxu0 0
        %1518 = vmatpush1.bf16.msra.mxu0 0
        %1519 = vmatprep.subr.bf16.mxu0 0
        %1520 = vmatpush1.bf16.msra.mxu0 0
        %1521 = vmatprep.subr.bf16.mxu0 0
        %1522 = vmatpush1.bf16.msra.mxu0 0
        %1523 = vmatprep.subr.bf16.mxu0 0
        %1524 = vmatpush1.bf16.msra.mxu0 0
        %1525 = vmatprep.subr.bf16.mxu0 0
        %1526 = vmatpush1.bf16.msra.mxu0 0
        %1527 = vmatprep.subr.bf16.mxu0 0
        %1528 = vmatpush1.bf16.msra.mxu0 0
        %1529 = vmatprep.subr.bf16.mxu0 0
        %1530 = vmatpush1.bf16.msra.mxu0 0
        %1531 = vmatprep.mubr.bf16.mxu0 0
        %1532 = vmatmul.mubr.bf16.gmra.mrb[0].mxu0 %v1497
        %v1533 = vpop.f32.mrb[0].mxu0
        %v1534 = vadd.f32 %v1482, %v1533
        %v1535 = vpop.f32.mrb[0].mxu0
        %v1536 = vpop.f32.mrb[0].mxu0
        %v1537 = vpop.f32.mrb[0].mxu0
        %1538 = vdwg.mxu0
        %v1539 = vmul.f32 %v1534, 0.5
        %v1540 = vmul.f32 %v1534, 0.044715
        %v1541 = vmul.f32 %v1540, %v1534
        %v1542 = vmul.f32 %v1541, %v1534
        %v1543 = vadd.f32 %v1534, %v1542
        %v1544 = vmul.f32 %v1543, 0.7978846
        %v1545 = vtanh.pop %v1544
        %v1546 = vadd.f32 %v1545, 1.0
        %v1547 = vmul.f32 %v1539, %v1546
        %v1548 = vpack.c.bf16 %v1547, %v1547
        %v1549 = vld [vmem:[%s14] sm:$0xf]
        %v1550 = vld [vmem:[%s14 + $0x4] sm:$0xf]
        %v1551 = vld [vmem:[%s14 + $0x8] sm:$0xf]
        %v1552 = vld [vmem:[%s14 + $0xc] sm:$0xf]
        %v1553 = vld [vmem:[%s14 + $0x10] sm:$0xf]
        %v1554 = vld [vmem:[%s14 + $0x14] sm:$0xf]
        %v1555 = vld [vmem:[%s14 + $0x18] sm:$0xf]
        %v1556 = vld [vmem:[%s14 + $0x1c] sm:$0xf]
        %v1557 = vld [vmem:[%s14 + $0x20] sm:$0xf]
        %v1558 = vld [vmem:[%s14 + $0x24] sm:$0xf]
        %v1559 = vld [vmem:[%s14 + $0x28] sm:$0xf]
        %v1560 = vld [vmem:[%s14 + $0x2c] sm:$0xf]
        %v1561 = vld [vmem:[%s14 + $0x30] sm:$0xf]
        %v1562 = vld [vmem:[%s14 + $0x34] sm:$0xf]
        %v1563 = vld [vmem:[%s14 + $0x38] sm:$0xf]
        %v1564 = vld [vmem:[%s14 + $0x3c] sm:$0xf]
        %v1565 = vld [vmem:[%s15] sm:$0x1]
        %v1567 = vlaneseq
        %v1568 = vshrl.u32 %v1567, 7
        %v1569 = vsub.s32 0, %v1568
        %v1570 = vrot.slane %v1565, %v1569
        %v1588 = vunpack.c.l.b16 %v1549
        %v1589 = vunpack.c.l.b16 %v1550
        %v1590 = vunpack.c.l.b16 %v1551
        %v1591 = vunpack.c.l.b16 %v1552
        %v1592 = vunpack.c.l.b16 %v1553
        %v1593 = vunpack.c.l.b16 %v1554
        %v1594 = vunpack.c.l.b16 %v1555
        %v1595 = vunpack.c.l.b16 %v1556
        %v1596 = vunpack.c.l.b16 %v1557
        %v1597 = vunpack.c.l.b16 %v1558
        %v1598 = vunpack.c.l.b16 %v1559
        %v1599 = vunpack.c.l.b16 %v1560
        %v1600 = vunpack.c.l.b16 %v1561
        %v1601 = vunpack.c.l.b16 %v1562
        %v1602 = vunpack.c.l.b16 %v1563
        %v1603 = vunpack.c.l.b16 %v1564
        %v1604 = vpack.c.b16 %v1589, %v1588
        %v1605 = vpack.c.b16 %v1591, %v1590
        %v1606 = vpack.c.b16 %v1593, %v1592
        %v1607 = vpack.c.b16 %v1595, %v1594
        %v1608 = vpack.c.b16 %v1597, %v1596
        %v1609 = vpack.c.b16 %v1599, %v1598
        %v1610 = vpack.c.b16 %v1601, %v1600
        %v1611 = vpack.c.b16 %v1603, %v1602
        %1620 = vmatprep.subr.bf16.mxu0 0
        %1621 = vmatpush1.bf16.msra.mxu0 %v1604
        %1622 = vmatprep.subr.bf16.mxu0 0
        %1623 = vmatpush1.bf16.msra.mxu0 %v1605
        %1624 = vmatprep.subr.bf16.mxu0 0
        %1625 = vmatpush1.bf16.msra.mxu0 %v1606
        %1626 = vmatprep.subr.bf16.mxu0 0
        %1627 = vmatpush1.bf16.msra.mxu0 %v1607
        %1628 = vmatprep.subr.bf16.mxu0 0
        %1629 = vmatpush1.bf16.msra.mxu0 %v1608
        %1630 = vmatprep.subr.bf16.mxu0 0
        %1631 = vmatpush1.bf16.msra.mxu0 %v1609
        %1632 = vmatprep.subr.bf16.mxu0 0
        %1633 = vmatpush1.bf16.msra.mxu0 %v1610
        %1634 = vmatprep.subr.bf16.mxu0 0
        %1635 = vmatpush1.bf16.msra.mxu0 %v1611
        %1636 = vmatprep.subr.bf16.mxu0 0
        %1637 = vmatpush1.bf16.msra.mxu0 0
        %1638 = vmatprep.subr.bf16.mxu0 0
        %1639 = vmatpush1.bf16.msra.mxu0 0
        %1640 = vmatprep.subr.bf16.mxu0 0
        %1641 = vmatpush1.bf16.msra.mxu0 0
        %1642 = vmatprep.subr.bf16.mxu0 0
        %1643 = vmatpush1.bf16.msra.mxu0 0
        %1644 = vmatprep.subr.bf16.mxu0 0
        %1645 = vmatpush1.bf16.msra.mxu0 0
        %1646 = vmatprep.subr.bf16.mxu0 0
        %1647 = vmatpush1.bf16.msra.mxu0 0
        %1648 = vmatprep.subr.bf16.mxu0 0
        %1649 = vmatpush1.bf16.msra.mxu0 0
        %1650 = vmatprep.subr.bf16.mxu0 0
        %1651 = vmatpush1.bf16.msra.mxu0 0
        %1652 = vmatprep.mubr.bf16.mxu0 0
        %1653 = vmatmul.mubr.bf16.gmra.mrb[0].mxu0 %v1548
        %v1654 = vpop.f32.mrb[0].mxu0
        %v1655 = vadd.f32 %v1570, %v1654
        %v1656 = vpop.f32.mrb[0].mxu0
        %v1657 = vpop.f32.mrb[0].mxu0
        %v1658 = vpop.f32.mrb[0].mxu0
        %1659 = vdwg.mxu0
        %v1660 = vadd.f32 %v1655, %v1471
        %v1661 = vld [vmem:[%s16] sm:$0x1]
        %v1662 = vld [vmem:[%s17] sm:$0x1]
        %v1663 = vsel %vm842, %v1660, 0.0
        %1664 = vadd.xlane.f32.xlu0 %v1663
        %v1665 = vpop.xlane.xlu0 %1664
        %v1666 = vmul.f32 %v1660, %v1660
        %v1667 = vsel %vm842, %v1666, 0.0
        %1668 = vadd.xlane.f32.xlu0 %v1667
        %v1669 = vpop.xlane.xlu0 %1668
        %v1670 = vmul.f32 %v1665, 0.03125
        %v1671 = vmul.f32 %v1669, 0.03125
        %v1672 = vmul.f32 %v1670, %v1670
        %v1673 = vsub.f32 %v1671, %v1672
        %v1674 = vmax.f32 %v1673, 0.0
        %v1675 = vsub.f32 %v1660, %v1670
        %v1676 = vadd.f32 %v1674, 1e-12
        %v1677 = vrsqrt.pop %v1676
        %v1678 = vmul.f32 %v1675, %v1677
        %v1680 = vlaneseq
        %v1681 = vshrl.u32 %v1680, 7
        %v1682 = vsub.s32 0, %v1681
        %v1683 = vrot.slane %v1661, %v1682
        %v1685 = vmul.f32 %v1678, %v1683
        %v1687 = vlaneseq
        %v1688 = vshrl.u32 %v1687, 7
        %v1689 = vsub.s32 0, %v1688
        %v1690 = vrot.slane %v1662, %v1689
        %v1692 = vadd.f32 %v1685, %v1690
        %1693 = vst.msk [vmem:[%s657] sm:$0xff] %vm842, %v1692
        %s1694 = sand.u32 %s450, 1
        %s1695 = scalar_lea.sflag [#allocation6], %s1694
        %s1696 = sand.u32 %s450, 1
        %s1697 = smul.addr %s1696, 8
        %s1698 = scalar_lea.vmem [#allocation12], %s1697
        // Predicated region
        $region113: #{tpu_custom_call.1} parent=91 // pred_check
          %p1699 = pneg %p460
        $region114: #{tpu_custom_call.1} parent=91 // pred_check_branch
          %1701 = sbr.rel (%p1699) target = $region116
        $region115: #{tpu_custom_call.1} parent=91 // pred_region
          %s1703 = ssub.s32 128, 128
          %1704 = vsyncadd %s1695, %s1703
          %s1705 = sadd.s32 %s40, %s39
          %s1706 = smul.addr %s1705, 128
          %s1707 = scalar_lea.hbm %s18, %s1706
          %s1709 = sshll.u32 %s1698, 4
          %s1710 = int_to_ptr.vmem [resolvable:$true] %s1709
          %1712 = dma.vmem_to_hbm [thread:$0]  %s1710, 128, %s1707, %s1695
        $region116: #{tpu_custom_call.1} parent=91 // pred_fallthru
          _
      $region92: #{tpu_custom_call.1} parent=5 // pred_fallthru
        _
      %p1713 = scmp.le.s32.totalorder 2, %s30
      // Predicated region
      $region117: #{tpu_custom_call.1} parent=5 // pred_check
        %p1714 = pneg %p1713
      $region118: #{tpu_custom_call.1} parent=5 // pred_check_branch
        %1716 = sbr.rel (%p1714) target = $region120
      $region119: #{tpu_custom_call.1} parent=5 // pred_region
        %s1717 = ssub.s32 %s30, 2
        // Predicated region
        $region121: #{tpu_custom_call.1} parent=119 // pred_check
          %p1718 = pneg %p466
        $region122: #{tpu_custom_call.1} parent=119 // pred_check_branch
          %1720 = sbr.rel (%p1718) target = $region124
        $region123: #{tpu_custom_call.1} parent=119 // pred_region
          %s1721 = sand.u32 %s451, 1
          %s1722 = scalar_lea.sflag [#allocation6], %s1721
          %s1723 = sand.u32 %s451, 1
          %s1724 = smul.addr %s1723, 8
          %s1725 = scalar_lea.vmem [#allocation12], %s1724
          %1726 = dma.done %s1722, 128
        $region124: #{tpu_custom_call.1} parent=119 // pred_fallthru
          _
      $region120: #{tpu_custom_call.1} parent=5 // pred_fallthru
        _
    $region6: #{tpu_custom_call.1} parent=1 // loop_footer
      %s34 = sadd.s32 1, %s30
    $region7: #{tpu_custom_call.1} parent=1 // loop_footer_branch
      %29 = sbr.rel target = $region3
    $region8: #{tpu_custom_call.1} parent=1 // loop_exit
      _
    %1727 = vsyncpa [#allocation5], 1
    %s1728 = scalar_lea.sflag [#allocation5], 1
    %1729 = vsyncpa %s1728, 1
    %1730 = vsyncpa [#allocation8], 1
    %1731 = vsyncpa [#allocation11], 1
    %1732 = vsyncpa [#allocation6], 1
    %s1733 = scalar_lea.sflag [#allocation6], 1
    %1734 = vsyncpa %s1733, 1

</llo_original>
